<compile_context>
chip_gen: v6e
topology: v6e:2x2x1
jax: 0.10.0
libtpu: 0.0.40
codegen_flags: <defaults>
</compile_context>

<pallas_src>
import math

import jax
import jax.numpy as jnp
from jax.experimental import pallas as pl
from jax.experimental.pallas import tpu as pltpu


def _round_up(v, m):
    return (v + m - 1) // m * m


def prepare_params(w2, w3, w4, s2, b2, s3, b3, s4, b4, cfg):
    """Fold PyTorch-layout conv weights + eval-mode BN into kernel params."""
    C, P, G = cfg["inplanes"], cfg["planes"], cfg["groups"]
    Cg, Pg = C // G, P // G
    Cr, Pr = _round_up(C, 128), _round_up(P, 128)

    def taps(w):
        # (P, C//G, 3) -> block-diagonal per-tap weights (3, Cr, Pr), bf16.
        wt = jnp.transpose(w.astype(jnp.float32), (2, 1, 0))      # (3, Cg, P)
        full = jnp.zeros((3, Cr, Pr), jnp.float32)
        for g in range(G):
            full = full.at[:, g * Cg:(g + 1) * Cg, g * Pg:(g + 1) * Pg].set(
                wt[:, :, g * Pg:(g + 1) * Pg])
        return full.astype(jnp.bfloat16)

    def pad_vec(v):
        return jnp.zeros((1, Pr), jnp.float32).at[0, :P].set(v.astype(jnp.float32))

    return dict(w2=taps(w2), w3=taps(w3), w4=taps(w4),
                s2=pad_vec(s2), b2=pad_vec(b2),
                s3=pad_vec(s3), b3=pad_vec(b3),
                s4=pad_vec(s4), b4=pad_vec(b4))


def scconv_pallas(x_nlc, p, cfg):
    """x_nlc: (N, L, C) float32.  Returns (N, Lout, planes) float32."""
    N, L, C = x_nlc.shape
    P = cfg["planes"]
    stride, pad, dil, r = cfg["stride"], cfg["padding"], cfg["dilation"], cfg["pooling_r"]

    # Shape constraints the PyTorch forward itself relies on.
    assert P == C, "identity add requires planes == inplanes"
    assert pad == dil and dil >= 1, "k3(x) must keep the length of x for torch.mul"
    # TODO(synk): general nearest-interp fallback for L % pooling_r != 0 (needs a
    # floor(i*Lp/L) row gather instead of the repeat-by-r strided store).
    assert L % r == 0, "fast nearest-upsample path assumes L % pooling_r == 0"
    Lp = L // r
    Lo4 = (L - 1) // stride + 1
    Cr, Pr = p["w3"].shape[1], p["w3"].shape[2]

    x_pad = jnp.pad(x_nlc, ((0, 0), (0, 0), (0, Cr - C)))

    def kernel(x_ref, w2_ref, w3_ref, w4_ref,
               s2_ref, b2_ref, s3_ref, b3_ref, s4_ref, b4_ref,
               o_ref, up_ref):
        x = x_ref[...]                                     # (L, Cr) f32
        s2 = s2_ref[...]; b2 = b2_ref[...]                 # (1, Pr) f32
        s3 = s3_ref[...]; b3 = b3_ref[...]
        s4 = s4_ref[...]; b4 = b4_ref[...]

        def shift_down(a, d):
            # out[i] = a[i - d], zero-filled at the top.
            if d == 0:
                return a
            if d >= a.shape[0]:
                return jnp.zeros_like(a)
            z = jnp.zeros((d, a.shape[1]), a.dtype)
            return jnp.concatenate([z, a[:a.shape[0] - d]], axis=0)

        def shift_up(a, d):
            # out[i] = a[i + d], zero-filled at the bottom.
            if d == 0:
                return a
            if d >= a.shape[0]:
                return jnp.zeros_like(a)
            z = jnp.zeros((d, a.shape[1]), a.dtype)
            return jnp.concatenate([a[d:], z], axis=0)

        def conv3(v, w_ref, scale, bias):
            # "same" 3-tap conv (padding == dilation); groups pre-fused into
            # block-diagonal (Cr, Pr) per-tap weights; bf16 operands, f32 acc.
            vb = v.astype(jnp.bfloat16)
            t0 = jnp.dot(vb, w_ref[0], preferred_element_type=jnp.float32)
            t1 = jnp.dot(vb, w_ref[1], preferred_element_type=jnp.float32)
            t2 = jnp.dot(vb, w_ref[2], preferred_element_type=jnp.float32)
            y = t1 + shift_down(t0, dil) + shift_up(t2, dil)
            return y * scale + bias

        # ---- k2 branch: AvgPool1d via r strided sublane loads ----
        acc = x_ref[pl.ds(0, Lp, stride=r), :]
        for k in range(1, r):
            acc = acc + x_ref[pl.ds(k, Lp, stride=r), :]
        xp = acc * (1.0 / r)                               # (Lp, Cr)
        # TODO(synk): eval-mode BatchNorm1d only; training-mode batch statistics
        # are not reproduced (folded scale/bias applied inside conv3).
        y2 = conv3(xp, w2_ref, s2, b2)                     # (Lp, Pr)

        # ---- nearest upsample Lp -> L: repeat each pooled row r times via
        # r strided sublane stores into the VMEM scratch ----
        for j in range(r):
            up_ref[pl.ds(j, Lp, stride=r), :] = y2

        # ---- sigmoid gate: sigmoid(identity + upsampled k2(x)) ----
        gate = jax.nn.sigmoid(x + up_ref[...])

        # ---- k3 branch ----
        y3 = conv3(x, w3_ref, s3, b3)
        out = y3 * gate

        # ---- k4 branch (stride applied as a strided row slice) ----
        y4 = conv3(out, w4_ref, s4, b4)                    # (L, Pr)
        if stride == 1:
            o_ref[...] = y4.astype(o_ref.dtype)
        else:
            up_ref[...] = y4                               # reuse scratch
            o_ref[...] = up_ref[pl.ds(0, Lo4, stride=stride), :].astype(o_ref.dtype)

    # TODO(synk): add an L-tile grid axis with +-dil (and pooled) halos so the
    # working set fits v7x's 64 MiB VMEM and megacore has work when N is small.
    grid_spec = pltpu.PrefetchScalarGridSpec(
        num_scalar_prefetch=0,
        grid=(N,),
        in_specs=[pl.BlockSpec((None, L, Cr), lambda n: (n, 0, 0))]
                + [pl.BlockSpec((3, Cr, Pr), lambda n: (0, 0, 0))] * 3
                + [pl.BlockSpec((1, Pr), lambda n: (0, 0))] * 6,
        out_specs=pl.BlockSpec((None, Lo4, Pr), lambda n: (n, 0, 0)),
        scratch_shapes=[pltpu.VMEM((L, Pr), jnp.float32)],
    )
    out = pl.pallas_call(
        kernel,
        out_shape=jax.ShapeDtypeStruct((N, Lo4, Pr), jnp.float32),
        grid_spec=grid_spec,
        compiler_params=pltpu.CompilerParams(dimension_semantics=("parallel",)),
    )(x_pad, p["w2"], p["w3"], p["w4"],
      p["s2"], p["b2"], p["s3"], p["b3"], p["s4"], p["b4"])
    return out[:, :, :P]


# ---------------------------- pure-JAX reference ----------------------------
def scconv_ref(x_ncl, p, cfg, round_bf16=False):
    """NCL reference.  round_bf16=True mimics the kernel's bf16 matmul operands."""
    stride, pad, dil = cfg["stride"], cfg["padding"], cfg["dilation"]
    g, r = cfg["groups"], cfg["pooling_r"]

    def rnd(v):
        return v.astype(jnp.bfloat16).astype(jnp.float32) if round_bf16 else v

    def conv(x, w, s):
        return jax.lax.conv_general_dilated(
            rnd(x), rnd(w), window_strides=(s,), padding=[(pad, pad)],
            rhs_dilation=(dil,), dimension_numbers=("NCH", "OIH", "NCH"),
            feature_group_count=g, precision=jax.lax.Precision.HIGHEST)

    def bn(y, scale, bias):
        return y * scale[None, :, None] + bias[None, :, None]

    N, C, L = x_ncl.shape
    Lp = L // r
    xp = x_ncl[:, :, :Lp * r].reshape(N, C, Lp, r).mean(-1)
    y2 = bn(conv(xp, p["w2"], 1), p["s2"], p["b2"])
    Lp2 = y2.shape[-1]
    idx = (jnp.arange(L) * Lp2) // L                       # nearest interpolate
    gate = jax.nn.sigmoid(x_ncl + y2[:, :, idx])
    y3 = bn(conv(x_ncl, p["w3"], 1), p["s3"], p["b3"])
    out = y3 * gate
    return bn(conv(out, p["w4"], stride), p["s4"], p["b4"])


if __name__ == "__main__":
    cfg = dict(inplanes=4, planes=4, stride=1, padding=1, dilation=1,
               groups=2, pooling_r=4)
    N, L = 2, 16
    C, P, G = cfg["inplanes"], cfg["planes"], cfg["groups"]

    key = jax.random.PRNGKey(0)
    ks = jax.random.split(key, 7)
    bound = 1.0 / math.sqrt((C // G) * 3)

    def conv_w(k):
        return jax.random.uniform(k, (P, C // G, 3), jnp.float32, -bound, bound)

    def bn_params(k):
        k1, k2, k3, k4 = jax.random.split(k, 4)
        gamma = jax.random.uniform(k1, (P,), jnp.float32, 0.8, 1.2)
        beta = 0.1 * jax.random.normal(k2, (P,), jnp.float32)
        mean = 0.1 * jax.random.normal(k3, (P,), jnp.float32)
        var = jax.random.uniform(k4, (P,), jnp.float32, 0.5, 1.5)
        scale = gamma * jax.lax.rsqrt(var + 1e-5)
        bias = beta - mean * scale
        return scale, bias

    w2, w3, w4 = conv_w(ks[0]), conv_w(ks[1]), conv_w(ks[2])
    s2, b2 = bn_params(ks[3])
    s3, b3 = bn_params(ks[4])
    s4, b4 = bn_params(ks[5])
    x_ncl = jax.random.normal(ks[6], (N, C, L), jnp.float32)

    ref_params = dict(w2=w2, w3=w3, w4=w4, s2=s2, b2=b2, s3=s3, b3=b3, s4=s4, b4=b4)
    out_f32 = scconv_ref(x_ncl, ref_params, cfg, round_bf16=False)
    out_bf16 = scconv_ref(x_ncl, ref_params, cfg, round_bf16=True)

    kp = prepare_params(w2, w3, w4, s2, b2, s3, b3, s4, b4, cfg)
    x_nlc = jnp.transpose(x_ncl, (0, 2, 1))                # NCL -> NLC for the kernel
    out_nlp = scconv_pallas(x_nlc, kp, cfg)
    out_ncl = jnp.transpose(out_nlp, (0, 2, 1))            # back to PyTorch NCL
    jax.block_until_ready(out_ncl)

    assert out_ncl.shape == out_f32.shape, (out_ncl.shape, out_f32.shape)
    err_bf16 = float(jnp.max(jnp.abs(out_ncl - out_bf16)))
    err_f32 = float(jnp.max(jnp.abs(out_ncl - out_f32)))
    assert err_bf16 < 1e-2, f"max abs err vs bf16-matched reference {err_bf16}"
    assert err_f32 < 3e-2, f"max abs err vs f32 reference {err_f32}"
    print("KERNEL_OK")
</pallas_src>

<mosaic_0001>
module attributes {stable_mosaic.version = 11 : i64} {
  func.func @kernel(%arg0: i32, %arg1: memref<1x16x128xf32, #tpu.memory_space<vmem>>, %arg2: memref<3x128x128xbf16, #tpu.memory_space<vmem>>, %arg3: memref<3x128x128xbf16, #tpu.memory_space<vmem>>, %arg4: memref<3x128x128xbf16, #tpu.memory_space<vmem>>, %arg5: memref<1x128xf32, #tpu.memory_space<vmem>>, %arg6: memref<1x128xf32, #tpu.memory_space<vmem>>, %arg7: memref<1x128xf32, #tpu.memory_space<vmem>>, %arg8: memref<1x128xf32, #tpu.memory_space<vmem>>, %arg9: memref<1x128xf32, #tpu.memory_space<vmem>>, %arg10: memref<1x128xf32, #tpu.memory_space<vmem>>, %arg11: memref<1x16x128xf32, #tpu.memory_space<vmem>>, %arg12: memref<16x128xf32, #tpu.memory_space<vmem>>) attributes {dimension_semantics = [#tpu.dimension_semantics<parallel>], iteration_bounds = array<i64: 2>, scalar_prefetch = 0 : i64, scratch_operands = 1 : i64, tpu.core_type = #tpu.core_type<tc>, window_params = [{transform_indices = @transform_0, window_bounds = array<i64: 1, 16, 128>}, {pipeline_mode = #tpu.pipeline_mode<synchronous>, transform_indices = @transform_1, window_bounds = array<i64: 3, 128, 128>}, {pipeline_mode = #tpu.pipeline_mode<synchronous>, transform_indices = @transform_2, window_bounds = array<i64: 3, 128, 128>}, {pipeline_mode = #tpu.pipeline_mode<synchronous>, transform_indices = @transform_3, window_bounds = array<i64: 3, 128, 128>}, {pipeline_mode = #tpu.pipeline_mode<synchronous>, transform_indices = @transform_4, window_bounds = array<i64: 1, 128>}, {pipeline_mode = #tpu.pipeline_mode<synchronous>, transform_indices = @transform_5, window_bounds = array<i64: 1, 128>}, {pipeline_mode = #tpu.pipeline_mode<synchronous>, transform_indices = @transform_6, window_bounds = array<i64: 1, 128>}, {pipeline_mode = #tpu.pipeline_mode<synchronous>, transform_indices = @transform_7, window_bounds = array<i64: 1, 128>}, {pipeline_mode = #tpu.pipeline_mode<synchronous>, transform_indices = @transform_8, window_bounds = array<i64: 1, 128>}, {pipeline_mode = #tpu.pipeline_mode<synchronous>, transform_indices = @transform_9, window_bounds = array<i64: 1, 128>}, {transform_indices = @transform_10, window_bounds = array<i64: 1, 16, 128>}]} {
    %c0 = arith.constant 0 : index
    %c0_0 = arith.constant 0 : index
    %c0_1 = arith.constant 0 : index
    %0 = vector.load %arg1[%c0, %c0_0, %c0_1] : memref<1x16x128xf32, #tpu.memory_space<vmem>>, vector<1x16x128xf32>
    %1 = vector.shape_cast %0 : vector<1x16x128xf32> to vector<16x128xf32>
    %c0_2 = arith.constant 0 : index
    %c0_3 = arith.constant 0 : index
    %2 = vector.load %arg5[%c0_2, %c0_3] : memref<1x128xf32, #tpu.memory_space<vmem>>, vector<1x128xf32>
    %c0_4 = arith.constant 0 : index
    %c0_5 = arith.constant 0 : index
    %3 = vector.load %arg6[%c0_4, %c0_5] : memref<1x128xf32, #tpu.memory_space<vmem>>, vector<1x128xf32>
    %c0_6 = arith.constant 0 : index
    %c0_7 = arith.constant 0 : index
    %4 = vector.load %arg7[%c0_6, %c0_7] : memref<1x128xf32, #tpu.memory_space<vmem>>, vector<1x128xf32>
    %c0_8 = arith.constant 0 : index
    %c0_9 = arith.constant 0 : index
    %5 = vector.load %arg8[%c0_8, %c0_9] : memref<1x128xf32, #tpu.memory_space<vmem>>, vector<1x128xf32>
    %c0_10 = arith.constant 0 : index
    %c0_11 = arith.constant 0 : index
    %6 = vector.load %arg9[%c0_10, %c0_11] : memref<1x128xf32, #tpu.memory_space<vmem>>, vector<1x128xf32>
    %c0_12 = arith.constant 0 : index
    %c0_13 = arith.constant 0 : index
    %7 = vector.load %arg10[%c0_12, %c0_13] : memref<1x128xf32, #tpu.memory_space<vmem>>, vector<1x128xf32>
    %c0_14 = arith.constant 0 : index
    %c0_15 = arith.constant 0 : index
    %c0_16 = arith.constant 0 : index
    %8 = tpu.strided_load %arg1[%c0_14, %c0_15, %c0_16] {strides = array<i32: 1, 4, 1>} : memref<1x16x128xf32, #tpu.memory_space<vmem>>, vector<1x4x128xf32>
    %9 = vector.shape_cast %8 : vector<1x4x128xf32> to vector<4x128xf32>
    %c0_17 = arith.constant 0 : index
    %c1 = arith.constant 1 : index
    %c0_18 = arith.constant 0 : index
    %10 = tpu.strided_load %arg1[%c0_17, %c1, %c0_18] {strides = array<i32: 1, 4, 1>} : memref<1x16x128xf32, #tpu.memory_space<vmem>>, vector<1x4x128xf32>
    %11 = vector.shape_cast %10 : vector<1x4x128xf32> to vector<4x128xf32>
    %12 = arith.addf %9, %11 : vector<4x128xf32>
    %c0_19 = arith.constant 0 : index
    %c2 = arith.constant 2 : index
    %c0_20 = arith.constant 0 : index
    %13 = tpu.strided_load %arg1[%c0_19, %c2, %c0_20] {strides = array<i32: 1, 4, 1>} : memref<1x16x128xf32, #tpu.memory_space<vmem>>, vector<1x4x128xf32>
    %14 = vector.shape_cast %13 : vector<1x4x128xf32> to vector<4x128xf32>
    %15 = arith.addf %12, %14 : vector<4x128xf32>
    %c0_21 = arith.constant 0 : index
    %c3 = arith.constant 3 : index
    %c0_22 = arith.constant 0 : index
    %16 = tpu.strided_load %arg1[%c0_21, %c3, %c0_22] {strides = array<i32: 1, 4, 1>} : memref<1x16x128xf32, #tpu.memory_space<vmem>>, vector<1x4x128xf32>
    %17 = vector.shape_cast %16 : vector<1x4x128xf32> to vector<4x128xf32>
    %18 = arith.addf %15, %17 : vector<4x128xf32>
    %cst = arith.constant 2.500000e-01 : f32
    %19 = vector.broadcast %cst : f32 to vector<4x128xf32>
    %20 = arith.mulf %18, %19 : vector<4x128xf32>
    %21 = arith.truncf %20 : vector<4x128xf32> to vector<4x128xbf16>
    %c0_23 = arith.constant 0 : index
    %c0_24 = arith.constant 0 : index
    %c0_25 = arith.constant 0 : index
    %22 = vector.load %arg2[%c0_23, %c0_24, %c0_25] : memref<3x128x128xbf16, #tpu.memory_space<vmem>>, vector<1x128x128xbf16>
    %23 = vector.shape_cast %22 : vector<1x128x128xbf16> to vector<128x128xbf16>
    %cst_26 = arith.constant dense<0.000000e+00> : vector<4x128xf32>
    %24 = tpu.matmul %21, %23, %cst_26 {dimension_numbers = #tpu.dot_dimension_numbers<[1], [0], [0], [1], [0, 0, 1, 1], [], []>} : vector<4x128xbf16>, vector<128x128xbf16>, vector<4x128xf32> -> vector<4x128xf32>
    %c1_27 = arith.constant 1 : index
    %c0_28 = arith.constant 0 : index
    %c0_29 = arith.constant 0 : index
    %25 = vector.load %arg2[%c1_27, %c0_28, %c0_29] : memref<3x128x128xbf16, #tpu.memory_space<vmem>>, vector<1x128x128xbf16>
    %26 = vector.shape_cast %25 : vector<1x128x128xbf16> to vector<128x128xbf16>
    %cst_30 = arith.constant dense<0.000000e+00> : vector<4x128xf32>
    %27 = tpu.matmul %21, %26, %cst_30 {dimension_numbers = #tpu.dot_dimension_numbers<[1], [0], [0], [1], [0, 0, 1, 1], [], []>} : vector<4x128xbf16>, vector<128x128xbf16>, vector<4x128xf32> -> vector<4x128xf32>
    %c2_31 = arith.constant 2 : index
    %c0_32 = arith.constant 0 : index
    %c0_33 = arith.constant 0 : index
    %28 = vector.load %arg2[%c2_31, %c0_32, %c0_33] : memref<3x128x128xbf16, #tpu.memory_space<vmem>>, vector<1x128x128xbf16>
    %29 = vector.shape_cast %28 : vector<1x128x128xbf16> to vector<128x128xbf16>
    %cst_34 = arith.constant dense<0.000000e+00> : vector<4x128xf32>
    %30 = tpu.matmul %21, %29, %cst_34 {dimension_numbers = #tpu.dot_dimension_numbers<[1], [0], [0], [1], [0, 0, 1, 1], [], []>} : vector<4x128xbf16>, vector<128x128xbf16>, vector<4x128xf32> -> vector<4x128xf32>
    %cst_35 = arith.constant 0.000000e+00 : f32
    %31 = vector.broadcast %cst_35 : f32 to vector<1x128xf32>
    %32 = vector.extract_strided_slice %24 {offsets = [0, 0], sizes = [3, 128], strides = [1, 1]} : vector<4x128xf32> to vector<3x128xf32>
    %33 = tpu.concatenate %31, %32 in 0 : vector<1x128xf32>, vector<3x128xf32> -> vector<4x128xf32>
    %34 = arith.addf %27, %33 : vector<4x128xf32>
    %cst_36 = arith.constant 0.000000e+00 : f32
    %35 = vector.broadcast %cst_36 : f32 to vector<1x128xf32>
    %36 = vector.extract_strided_slice %30 {offsets = [1, 0], sizes = [3, 128], strides = [1, 1]} : vector<4x128xf32> to vector<3x128xf32>
    %37 = tpu.concatenate %36, %35 in 0 : vector<3x128xf32>, vector<1x128xf32> -> vector<4x128xf32>
    %38 = arith.addf %34, %37 : vector<4x128xf32>
    %39 = vector.broadcast %2 : vector<1x128xf32> to vector<4x128xf32>
    %40 = arith.mulf %38, %39 : vector<4x128xf32>
    %41 = vector.broadcast %3 : vector<1x128xf32> to vector<4x128xf32>
    %42 = arith.addf %40, %41 : vector<4x128xf32>
    %c0_37 = arith.constant 0 : index
    %c0_38 = arith.constant 0 : index
    %43 = tpu.strided_load %arg12[%c0_37, %c0_38] {strides = array<i32: 4, 1>} : memref<16x128xf32, #tpu.memory_space<vmem>>, vector<4x128xf32>
    tpu.strided_store %arg12[%c0_37, %c0_38], %42 {strides = array<i32: 4, 1>} : memref<16x128xf32, #tpu.memory_space<vmem>>, vector<4x128xf32>
    %c1_39 = arith.constant 1 : index
    %c0_40 = arith.constant 0 : index
    %44 = tpu.strided_load %arg12[%c1_39, %c0_40] {strides = array<i32: 4, 1>} : memref<16x128xf32, #tpu.memory_space<vmem>>, vector<4x128xf32>
    tpu.strided_store %arg12[%c1_39, %c0_40], %42 {strides = array<i32: 4, 1>} : memref<16x128xf32, #tpu.memory_space<vmem>>, vector<4x128xf32>
    %c2_41 = arith.constant 2 : index
    %c0_42 = arith.constant 0 : index
    %45 = tpu.strided_load %arg12[%c2_41, %c0_42] {strides = array<i32: 4, 1>} : memref<16x128xf32, #tpu.memory_space<vmem>>, vector<4x128xf32>
    tpu.strided_store %arg12[%c2_41, %c0_42], %42 {strides = array<i32: 4, 1>} : memref<16x128xf32, #tpu.memory_space<vmem>>, vector<4x128xf32>
    %c3_43 = arith.constant 3 : index
    %c0_44 = arith.constant 0 : index
    %46 = tpu.strided_load %arg12[%c3_43, %c0_44] {strides = array<i32: 4, 1>} : memref<16x128xf32, #tpu.memory_space<vmem>>, vector<4x128xf32>
    tpu.strided_store %arg12[%c3_43, %c0_44], %42 {strides = array<i32: 4, 1>} : memref<16x128xf32, #tpu.memory_space<vmem>>, vector<4x128xf32>
    %c0_45 = arith.constant 0 : index
    %c0_46 = arith.constant 0 : index
    %47 = vector.load %arg12[%c0_45, %c0_46] : memref<16x128xf32, #tpu.memory_space<vmem>>, vector<16x128xf32>
    %48 = arith.addf %1, %47 : vector<16x128xf32>
    %49 = arith.negf %48 : vector<16x128xf32>
    %50 = math.exp %49 : vector<16x128xf32>
    %cst_47 = arith.constant 1.000000e+00 : f32
    %51 = vector.broadcast %cst_47 : f32 to vector<16x128xf32>
    %52 = arith.addf %51, %50 : vector<16x128xf32>
    %53 = arith.divf %51, %52 : vector<16x128xf32>
    %54 = arith.truncf %1 : vector<16x128xf32> to vector<16x128xbf16>
    %c0_48 = arith.constant 0 : index
    %c0_49 = arith.constant 0 : index
    %c0_50 = arith.constant 0 : index
    %55 = vector.load %arg3[%c0_48, %c0_49, %c0_50] : memref<3x128x128xbf16, #tpu.memory_space<vmem>>, vector<1x128x128xbf16>
    %56 = vector.shape_cast %55 : vector<1x128x128xbf16> to vector<128x128xbf16>
    %cst_51 = arith.constant dense<0.000000e+00> : vector<16x128xf32>
    %57 = tpu.matmul %54, %56, %cst_51 {dimension_numbers = #tpu.dot_dimension_numbers<[1], [0], [0], [1], [0, 0, 1, 1], [], []>} : vector<16x128xbf16>, vector<128x128xbf16>, vector<16x128xf32> -> vector<16x128xf32>
    %c1_52 = arith.constant 1 : index
    %c0_53 = arith.constant 0 : index
    %c0_54 = arith.constant 0 : index
    %58 = vector.load %arg3[%c1_52, %c0_53, %c0_54] : memref<3x128x128xbf16, #tpu.memory_space<vmem>>, vector<1x128x128xbf16>
    %59 = vector.shape_cast %58 : vector<1x128x128xbf16> to vector<128x128xbf16>
    %cst_55 = arith.constant dense<0.000000e+00> : vector<16x128xf32>
    %60 = tpu.matmul %54, %59, %cst_55 {dimension_numbers = #tpu.dot_dimension_numbers<[1], [0], [0], [1], [0, 0, 1, 1], [], []>} : vector<16x128xbf16>, vector<128x128xbf16>, vector<16x128xf32> -> vector<16x128xf32>
    %c2_56 = arith.constant 2 : index
    %c0_57 = arith.constant 0 : index
    %c0_58 = arith.constant 0 : index
    %61 = vector.load %arg3[%c2_56, %c0_57, %c0_58] : memref<3x128x128xbf16, #tpu.memory_space<vmem>>, vector<1x128x128xbf16>
    %62 = vector.shape_cast %61 : vector<1x128x128xbf16> to vector<128x128xbf16>
    %cst_59 = arith.constant dense<0.000000e+00> : vector<16x128xf32>
    %63 = tpu.matmul %54, %62, %cst_59 {dimension_numbers = #tpu.dot_dimension_numbers<[1], [0], [0], [1], [0, 0, 1, 1], [], []>} : vector<16x128xbf16>, vector<128x128xbf16>, vector<16x128xf32> -> vector<16x128xf32>
    %cst_60 = arith.constant 0.000000e+00 : f32
    %64 = vector.broadcast %cst_60 : f32 to vector<1x128xf32>
    %65 = vector.extract_strided_slice %57 {offsets = [0, 0], sizes = [15, 128], strides = [1, 1]} : vector<16x128xf32> to vector<15x128xf32>
    %66 = tpu.concatenate %64, %65 in 0 : vector<1x128xf32>, vector<15x128xf32> -> vector<16x128xf32>
    %67 = arith.addf %60, %66 : vector<16x128xf32>
    %cst_61 = arith.constant 0.000000e+00 : f32
    %68 = vector.broadcast %cst_61 : f32 to vector<1x128xf32>
    %69 = vector.extract_strided_slice %63 {offsets = [1, 0], sizes = [15, 128], strides = [1, 1]} : vector<16x128xf32> to vector<15x128xf32>
    %70 = tpu.concatenate %69, %68 in 0 : vector<15x128xf32>, vector<1x128xf32> -> vector<16x128xf32>
    %71 = arith.addf %67, %70 : vector<16x128xf32>
    %72 = vector.broadcast %4 : vector<1x128xf32> to vector<16x128xf32>
    %73 = arith.mulf %71, %72 : vector<16x128xf32>
    %74 = vector.broadcast %5 : vector<1x128xf32> to vector<16x128xf32>
    %75 = arith.addf %73, %74 : vector<16x128xf32>
    %76 = arith.mulf %75, %53 : vector<16x128xf32>
    %77 = arith.truncf %76 : vector<16x128xf32> to vector<16x128xbf16>
    %c0_62 = arith.constant 0 : index
    %c0_63 = arith.constant 0 : index
    %c0_64 = arith.constant 0 : index
    %78 = vector.load %arg4[%c0_62, %c0_63, %c0_64] : memref<3x128x128xbf16, #tpu.memory_space<vmem>>, vector<1x128x128xbf16>
    %79 = vector.shape_cast %78 : vector<1x128x128xbf16> to vector<128x128xbf16>
    %cst_65 = arith.constant dense<0.000000e+00> : vector<16x128xf32>
    %80 = tpu.matmul %77, %79, %cst_65 {dimension_numbers = #tpu.dot_dimension_numbers<[1], [0], [0], [1], [0, 0, 1, 1], [], []>} : vector<16x128xbf16>, vector<128x128xbf16>, vector<16x128xf32> -> vector<16x128xf32>
    %c1_66 = arith.constant 1 : index
    %c0_67 = arith.constant 0 : index
    %c0_68 = arith.constant 0 : index
    %81 = vector.load %arg4[%c1_66, %c0_67, %c0_68] : memref<3x128x128xbf16, #tpu.memory_space<vmem>>, vector<1x128x128xbf16>
    %82 = vector.shape_cast %81 : vector<1x128x128xbf16> to vector<128x128xbf16>
    %cst_69 = arith.constant dense<0.000000e+00> : vector<16x128xf32>
    %83 = tpu.matmul %77, %82, %cst_69 {dimension_numbers = #tpu.dot_dimension_numbers<[1], [0], [0], [1], [0, 0, 1, 1], [], []>} : vector<16x128xbf16>, vector<128x128xbf16>, vector<16x128xf32> -> vector<16x128xf32>
    %c2_70 = arith.constant 2 : index
    %c0_71 = arith.constant 0 : index
    %c0_72 = arith.constant 0 : index
    %84 = vector.load %arg4[%c2_70, %c0_71, %c0_72] : memref<3x128x128xbf16, #tpu.memory_space<vmem>>, vector<1x128x128xbf16>
    %85 = vector.shape_cast %84 : vector<1x128x128xbf16> to vector<128x128xbf16>
    %cst_73 = arith.constant dense<0.000000e+00> : vector<16x128xf32>
    %86 = tpu.matmul %77, %85, %cst_73 {dimension_numbers = #tpu.dot_dimension_numbers<[1], [0], [0], [1], [0, 0, 1, 1], [], []>} : vector<16x128xbf16>, vector<128x128xbf16>, vector<16x128xf32> -> vector<16x128xf32>
    %cst_74 = arith.constant 0.000000e+00 : f32
    %87 = vector.broadcast %cst_74 : f32 to vector<1x128xf32>
    %88 = vector.extract_strided_slice %80 {offsets = [0, 0], sizes = [15, 128], strides = [1, 1]} : vector<16x128xf32> to vector<15x128xf32>
    %89 = tpu.concatenate %87, %88 in 0 : vector<1x128xf32>, vector<15x128xf32> -> vector<16x128xf32>
    %90 = arith.addf %83, %89 : vector<16x128xf32>
    %cst_75 = arith.constant 0.000000e+00 : f32
    %91 = vector.broadcast %cst_75 : f32 to vector<1x128xf32>
    %92 = vector.extract_strided_slice %86 {offsets = [1, 0], sizes = [15, 128], strides = [1, 1]} : vector<16x128xf32> to vector<15x128xf32>
    %93 = tpu.concatenate %92, %91 in 0 : vector<15x128xf32>, vector<1x128xf32> -> vector<16x128xf32>
    %94 = arith.addf %90, %93 : vector<16x128xf32>
    %95 = vector.broadcast %6 : vector<1x128xf32> to vector<16x128xf32>
    %96 = arith.mulf %94, %95 : vector<16x128xf32>
    %97 = vector.broadcast %7 : vector<1x128xf32> to vector<16x128xf32>
    %98 = arith.addf %96, %97 : vector<16x128xf32>
    %c0_76 = arith.constant 0 : index
    %c0_77 = arith.constant 0 : index
    %c0_78 = arith.constant 0 : index
    %99 = vector.load %arg11[%c0_76, %c0_77, %c0_78] : memref<1x16x128xf32, #tpu.memory_space<vmem>>, vector<1x16x128xf32>
    %100 = vector.shape_cast %99 : vector<1x16x128xf32> to vector<16x128xf32>
    %101 = vector.shape_cast %98 : vector<16x128xf32> to vector<1x16x128xf32>
    tpu.vector_store %arg11[%c0_76, %c0_77, %c0_78], %101 {strides = array<i32>} : memref<1x16x128xf32, #tpu.memory_space<vmem>>, vector<1x16x128xf32>,
    return
  }
  func.func @transform_0(%arg0: i32) -> (i32, i32, i32) {
    %c0_i32 = arith.constant 0 : i32
    %c0_i32_0 = arith.constant 0 : i32
    %c0_i32_1 = arith.constant 0 : i32
    return %arg0, %c0_i32, %c0_i32_0 : i32, i32, i32
  }
  func.func @transform_1(%arg0: i32) -> (i32, i32, i32) {
    %c0_i32 = arith.constant 0 : i32
    %c0_i32_0 = arith.constant 0 : i32
    %c0_i32_1 = arith.constant 0 : i32
    %c0_i32_2 = arith.constant 0 : i32
    return %c0_i32, %c0_i32_0, %c0_i32_1 : i32, i32, i32
  }
  func.func @transform_2(%arg0: i32) -> (i32, i32, i32) {
    %c0_i32 = arith.constant 0 : i32
    %c0_i32_0 = arith.constant 0 : i32
    %c0_i32_1 = arith.constant 0 : i32
    %c0_i32_2 = arith.constant 0 : i32
    return %c0_i32, %c0_i32_0, %c0_i32_1 : i32, i32, i32
  }
  func.func @transform_3(%arg0: i32) -> (i32, i32, i32) {
    %c0_i32 = arith.constant 0 : i32
    %c0_i32_0 = arith.constant 0 : i32
    %c0_i32_1 = arith.constant 0 : i32
    %c0_i32_2 = arith.constant 0 : i32
    return %c0_i32, %c0_i32_0, %c0_i32_1 : i32, i32, i32
  }
  func.func @transform_4(%arg0: i32) -> (i32, i32) {
    %c0_i32 = arith.constant 0 : i32
    %c0_i32_0 = arith.constant 0 : i32
    %c0_i32_1 = arith.constant 0 : i32
    return %c0_i32, %c0_i32_0 : i32, i32
  }
  func.func @transform_5(%arg0: i32) -> (i32, i32) {
    %c0_i32 = arith.constant 0 : i32
    %c0_i32_0 = arith.constant 0 : i32
    %c0_i32_1 = arith.constant 0 : i32
    return %c0_i32, %c0_i32_0 : i32, i32
  }
  func.func @transform_6(%arg0: i32) -> (i32, i32) {
    %c0_i32 = arith.constant 0 : i32
    %c0_i32_0 = arith.constant 0 : i32
    %c0_i32_1 = arith.constant 0 : i32
    return %c0_i32, %c0_i32_0 : i32, i32
  }
  func.func @transform_7(%arg0: i32) -> (i32, i32) {
    %c0_i32 = arith.constant 0 : i32
    %c0_i32_0 = arith.constant 0 : i32
    %c0_i32_1 = arith.constant 0 : i32
    return %c0_i32, %c0_i32_0 : i32, i32
  }
  func.func @transform_8(%arg0: i32) -> (i32, i32) {
    %c0_i32 = arith.constant 0 : i32
    %c0_i32_0 = arith.constant 0 : i32
    %c0_i32_1 = arith.constant 0 : i32
    return %c0_i32, %c0_i32_0 : i32, i32
  }
  func.func @transform_9(%arg0: i32) -> (i32, i32) {
    %c0_i32 = arith.constant 0 : i32
    %c0_i32_0 = arith.constant 0 : i32
    %c0_i32_1 = arith.constant 0 : i32
    return %c0_i32, %c0_i32_0 : i32, i32
  }
  func.func @transform_10(%arg0: i32) -> (i32, i32, i32) {
    %c0_i32 = arith.constant 0 : i32
    %c0_i32_0 = arith.constant 0 : i32
    %c0_i32_1 = arith.constant 0 : i32
    return %arg0, %c0_i32, %c0_i32_0 : i32, i32, i32
  }
}

</mosaic_0001>

<llo_original>
// kernel: tpu_custom_call.1
$region0: #{tpu_custom_call.1}
  #allocation0 [shape = 'u32[]', space=smem, size = 0x4, offset = 0x4, fixed_abs, tag = 'smem constant byte address 0x4 - core index']
  #allocation1 [shape = 'u32[144,128]{1,0:T(1,128)}', space=vmem, size = 0x12000, scoped, tag = 'internal scratch']
  #allocation2 [shape = 'f32[16,128]{1,0:T(8,128)}', space=vmem, size = 0x2000, scoped, tag = 'scratch operand']
  %s0 = inlined_call_operand.hbm [shape: f32[2,16,128], index: 0, kind: input, shape index: {}]
  %s1 = inlined_call_operand.hbm [shape: bf16[3,128,128], index: 1, kind: input, shape index: {}]
  %s2 = inlined_call_operand.hbm [shape: bf16[3,128,128], index: 2, kind: input, shape index: {}]
  %s3 = inlined_call_operand.hbm [shape: bf16[3,128,128], index: 3, kind: input, shape index: {}]
  %s4 = inlined_call_operand.vmem [shape: f32[1,128], index: 4, kind: input, shape index: {}]
  %s5 = inlined_call_operand.vmem [shape: f32[1,128], index: 5, kind: input, shape index: {}]
  %s6 = inlined_call_operand.vmem [shape: f32[1,128], index: 6, kind: input, shape index: {}]
  %s7 = inlined_call_operand.vmem [shape: f32[1,128], index: 7, kind: input, shape index: {}]
  %s8 = inlined_call_operand.vmem [shape: f32[1,128], index: 8, kind: input, shape index: {}]
  %s9 = inlined_call_operand.vmem [shape: f32[1,128], index: 9, kind: input, shape index: {}]
  %s10 = inlined_call_operand.hbm [shape: f32[2,16,128], index: 10, kind: output, shape index: {}]
  %s11 = sld [smem:[#allocation0]]
  $region89: #{tpu_custom_call.1} parent=0
    _
  %s13 = ssub.s32 1, %s11
  %s14 = scalar_select 0, %s13, %s11
  $region1: #{tpu_custom_call.1} parent=0
    #allocation3 [shape = 'u8[16384]{0}', space=vmem, size = 0x4000, scoped, tag = 'input window, operand 0']
    #allocation4 [shape = 's32[2]{0}', space=sflag, size = 0x8, scoped, tag = 'scoped memory for tpu_custom_call.1']
    #allocation5 [shape = 's32[2]{0}', space=sflag, size = 0x8, scoped, tag = 'scoped memory for tpu_custom_call.1']
    #allocation6 [shape = 'u8[98304]{0}', space=vmem, size = 0x18000, scoped, tag = 'input window, operand 1, single buffered']
    #allocation7 [shape = 's32[1]{0}', space=sflag, size = 0x4, scoped, tag = 'scoped memory for tpu_custom_call.1']
    #allocation8 [shape = 'u8[98304]{0}', space=vmem, size = 0x18000, scoped, tag = 'input window, operand 2, single buffered']
    #allocation9 [shape = 'u8[98304]{0}', space=vmem, size = 0x18000, scoped, tag = 'input window, operand 3, single buffered']
    #allocation10 [shape = 's32[1]{0}', space=sflag, size = 0x4, scoped, tag = 'scoped memory for tpu_custom_call.1']
    #allocation11 [shape = 'u8[16384]{0}', space=vmem, size = 0x4000, scoped, tag = 'output window, operand 0']
    %15 = vsyncpa [#allocation4], 0
    %s16 = scalar_lea.sflag [#allocation4], 1
    %17 = vsyncpa %s16, 0
    %18 = vsyncpa [#allocation7], 0
    %19 = vsyncpa [#allocation10], 0
    %20 = vsyncpa [#allocation5], 0
    %s21 = scalar_lea.sflag [#allocation5], 1
    %22 = vsyncpa %s21, 0
    loop: start=0, step=1, limit=4
    $region2: #{tpu_custom_call.1} parent=1 // loop_pre_header
      _
    $region3: #{tpu_custom_call.1} parent=1 // loop_header
      %s24 = sphi 0, %s28
      %p25 = scmp.ge.s32.totalorder %s24, 4
      %s34 = sphi 0, %s36
      %s37 = sphi 0, %s34
      %s38 = sphi 0, %s37
      %s54 = sphi 0, %s38
      %s58 = sphi 0, %s58
      %s60 = sphi 0, %s58
      %s61 = sphi 0, %s60
      %s75 = sphi 0, %s61
      %s79 = sphi 0, %s79
      %s81 = sphi 0, %s79
      %s82 = sphi 0, %s81
      %s96 = sphi 0, %s82
      %s100 = sphi 0, %s100
      %s102 = sphi 0, %s100
      %s103 = sphi 0, %s102
      %s117 = sphi 0, %s103
      %s121 = sphi 0, %s121
      %s123 = sphi 0, %s121
      %s124 = sphi 0, %s123
      %s138 = sphi 0, %s124
      %s142 = sphi 0, %s142
      %s144 = sphi 0, %s142
      %s145 = sphi 0, %s144
      %s159 = sphi 0, %s145
      %s163 = sphi 0, %s163
      %s165 = sphi 0, %s163
      %s166 = sphi 0, %s165
      %s180 = sphi 0, %s166
      %s184 = sphi 0, %s184
      %s186 = sphi 0, %s184
      %s187 = sphi 0, %s186
      %s201 = sphi 0, %s187
      %s205 = sphi 0, %s205
      %s207 = sphi 0, %s205
      %s208 = sphi 0, %s207
      %s222 = sphi 0, %s208
      %s226 = sphi 0, %s226
      %s228 = sphi 0, %s226
      %s229 = sphi 0, %s228
      %s243 = sphi 0, %s229
      %s249 = sphi 0, %s251
      %s252 = sphi 0, %s249
      %s253 = sphi 0, %s252
      %s269 = sphi 0, %s253
    $region4: #{tpu_custom_call.1} parent=1 // loop_header_branch
      %27 = sbr.rel (%p25) target = $region8
    $region5: #{tpu_custom_call.1} parent=1 // loop_body
      %s29 = ssub.s32 %s24, 1
      %s30 = ssub.s32 %s24, 2
      %s31 = sadd.s32 %s24, 1
      %s32 = ssub.s32 %s24, %s31
      %p33 = scmp.eq.s32.totalorder %s32, 0
      %s35 = sadd.s32 %s34, 1
      %s36 = scalar_select %p33, %s34, %s35
      %p39 = pneg %p33
      %p40 = scmp.eq.s32.totalorder %s24, 1
      %p41 = por %p39, %p40
      %p42 = scmp.ne.s32.totalorder %s34, %s37
      %p43 = scmp.eq.s32.totalorder %s24, 0
      %p44 = por %p42, %p43
      %p45 = scmp.ne.s32.totalorder %s34, %s37
      %p46 = scmp.eq.s32.totalorder %s29, 1
      %p47 = por %p45, %p46
      %p48 = scmp.ne.s32.totalorder %s37, %s38
      %p49 = scmp.eq.s32.totalorder %s29, 0
      %p50 = por %p48, %p49
      %p51 = scmp.ne.s32.totalorder %s37, %s38
      %p52 = scmp.eq.s32.totalorder %s30, 1
      %p53 = por %p51, %p52
      %p55 = scmp.ne.s32.totalorder %s38, %s54
      %p56 = scmp.eq.s32.totalorder %s30, 0
      %p57 = por %p55, %p56
      %s59 = sadd.s32 %s58, 1
      %p62 = scmp.eq.s32.totalorder %s24, 1
      %p63 = scmp.ne.s32.totalorder %s58, %s60
      %p64 = scmp.eq.s32.totalorder %s24, 0
      %p65 = por %p63, %p64
      %p66 = scmp.ne.s32.totalorder %s58, %s60
      %p67 = scmp.eq.s32.totalorder %s29, 1
      %p68 = por %p66, %p67
      %p69 = scmp.ne.s32.totalorder %s60, %s61
      %p70 = scmp.eq.s32.totalorder %s29, 0
      %p71 = por %p69, %p70
      %p72 = scmp.ne.s32.totalorder %s60, %s61
      %p73 = scmp.eq.s32.totalorder %s30, 1
      %p74 = por %p72, %p73
      %p76 = scmp.ne.s32.totalorder %s61, %s75
      %p77 = scmp.eq.s32.totalorder %s30, 0
      %p78 = por %p76, %p77
      %s80 = sadd.s32 %s79, 1
      %p83 = scmp.eq.s32.totalorder %s24, 1
      %p84 = scmp.ne.s32.totalorder %s79, %s81
      %p85 = scmp.eq.s32.totalorder %s24, 0
      %p86 = por %p84, %p85
      %p87 = scmp.ne.s32.totalorder %s79, %s81
      %p88 = scmp.eq.s32.totalorder %s29, 1
      %p89 = por %p87, %p88
      %p90 = scmp.ne.s32.totalorder %s81, %s82
      %p91 = scmp.eq.s32.totalorder %s29, 0
      %p92 = por %p90, %p91
      %p93 = scmp.ne.s32.totalorder %s81, %s82
      %p94 = scmp.eq.s32.totalorder %s30, 1
      %p95 = por %p93, %p94
      %p97 = scmp.ne.s32.totalorder %s82, %s96
      %p98 = scmp.eq.s32.totalorder %s30, 0
      %p99 = por %p97, %p98
      %s101 = sadd.s32 %s100, 1
      %p104 = scmp.eq.s32.totalorder %s24, 1
      %p105 = scmp.ne.s32.totalorder %s100, %s102
      %p106 = scmp.eq.s32.totalorder %s24, 0
      %p107 = por %p105, %p106
      %p108 = scmp.ne.s32.totalorder %s100, %s102
      %p109 = scmp.eq.s32.totalorder %s29, 1
      %p110 = por %p108, %p109
      %p111 = scmp.ne.s32.totalorder %s102, %s103
      %p112 = scmp.eq.s32.totalorder %s29, 0
      %p113 = por %p111, %p112
      %p114 = scmp.ne.s32.totalorder %s102, %s103
      %p115 = scmp.eq.s32.totalorder %s30, 1
      %p116 = por %p114, %p115
      %p118 = scmp.ne.s32.totalorder %s103, %s117
      %p119 = scmp.eq.s32.totalorder %s30, 0
      %p120 = por %p118, %p119
      %s122 = sadd.s32 %s121, 1
      %p125 = scmp.eq.s32.totalorder %s24, 1
      %p126 = scmp.ne.s32.totalorder %s121, %s123
      %p127 = scmp.eq.s32.totalorder %s24, 0
      %p128 = por %p126, %p127
      %p129 = scmp.ne.s32.totalorder %s121, %s123
      %p130 = scmp.eq.s32.totalorder %s29, 1
      %p131 = por %p129, %p130
      %p132 = scmp.ne.s32.totalorder %s123, %s124
      %p133 = scmp.eq.s32.totalorder %s29, 0
      %p134 = por %p132, %p133
      %p135 = scmp.ne.s32.totalorder %s123, %s124
      %p136 = scmp.eq.s32.totalorder %s30, 1
      %p137 = por %p135, %p136
      %p139 = scmp.ne.s32.totalorder %s124, %s138
      %p140 = scmp.eq.s32.totalorder %s30, 0
      %p141 = por %p139, %p140
      %s143 = sadd.s32 %s142, 1
      %p146 = scmp.eq.s32.totalorder %s24, 1
      %p147 = scmp.ne.s32.totalorder %s142, %s144
      %p148 = scmp.eq.s32.totalorder %s24, 0
      %p149 = por %p147, %p148
      %p150 = scmp.ne.s32.totalorder %s142, %s144
      %p151 = scmp.eq.s32.totalorder %s29, 1
      %p152 = por %p150, %p151
      %p153 = scmp.ne.s32.totalorder %s144, %s145
      %p154 = scmp.eq.s32.totalorder %s29, 0
      %p155 = por %p153, %p154
      %p156 = scmp.ne.s32.totalorder %s144, %s145
      %p157 = scmp.eq.s32.totalorder %s30, 1
      %p158 = por %p156, %p157
      %p160 = scmp.ne.s32.totalorder %s145, %s159
      %p161 = scmp.eq.s32.totalorder %s30, 0
      %p162 = por %p160, %p161
      %s164 = sadd.s32 %s163, 1
      %p167 = scmp.eq.s32.totalorder %s24, 1
      %p168 = scmp.ne.s32.totalorder %s163, %s165
      %p169 = scmp.eq.s32.totalorder %s24, 0
      %p170 = por %p168, %p169
      %p171 = scmp.ne.s32.totalorder %s163, %s165
      %p172 = scmp.eq.s32.totalorder %s29, 1
      %p173 = por %p171, %p172
      %p174 = scmp.ne.s32.totalorder %s165, %s166
      %p175 = scmp.eq.s32.totalorder %s29, 0
      %p176 = por %p174, %p175
      %p177 = scmp.ne.s32.totalorder %s165, %s166
      %p178 = scmp.eq.s32.totalorder %s30, 1
      %p179 = por %p177, %p178
      %p181 = scmp.ne.s32.totalorder %s166, %s180
      %p182 = scmp.eq.s32.totalorder %s30, 0
      %p183 = por %p181, %p182
      %s185 = sadd.s32 %s184, 1
      %p188 = scmp.eq.s32.totalorder %s24, 1
      %p189 = scmp.ne.s32.totalorder %s184, %s186
      %p190 = scmp.eq.s32.totalorder %s24, 0
      %p191 = por %p189, %p190
      %p192 = scmp.ne.s32.totalorder %s184, %s186
      %p193 = scmp.eq.s32.totalorder %s29, 1
      %p194 = por %p192, %p193
      %p195 = scmp.ne.s32.totalorder %s186, %s187
      %p196 = scmp.eq.s32.totalorder %s29, 0
      %p197 = por %p195, %p196
      %p198 = scmp.ne.s32.totalorder %s186, %s187
      %p199 = scmp.eq.s32.totalorder %s30, 1
      %p200 = por %p198, %p199
      %p202 = scmp.ne.s32.totalorder %s187, %s201
      %p203 = scmp.eq.s32.totalorder %s30, 0
      %p204 = por %p202, %p203
      %s206 = sadd.s32 %s205, 1
      %p209 = scmp.eq.s32.totalorder %s24, 1
      %p210 = scmp.ne.s32.totalorder %s205, %s207
      %p211 = scmp.eq.s32.totalorder %s24, 0
      %p212 = por %p210, %p211
      %p213 = scmp.ne.s32.totalorder %s205, %s207
      %p214 = scmp.eq.s32.totalorder %s29, 1
      %p215 = por %p213, %p214
      %p216 = scmp.ne.s32.totalorder %s207, %s208
      %p217 = scmp.eq.s32.totalorder %s29, 0
      %p218 = por %p216, %p217
      %p219 = scmp.ne.s32.totalorder %s207, %s208
      %p220 = scmp.eq.s32.totalorder %s30, 1
      %p221 = por %p219, %p220
      %p223 = scmp.ne.s32.totalorder %s208, %s222
      %p224 = scmp.eq.s32.totalorder %s30, 0
      %p225 = por %p223, %p224
      %s227 = sadd.s32 %s226, 1
      %p230 = scmp.eq.s32.totalorder %s24, 1
      %p231 = scmp.ne.s32.totalorder %s226, %s228
      %p232 = scmp.eq.s32.totalorder %s24, 0
      %p233 = por %p231, %p232
      %p234 = scmp.ne.s32.totalorder %s226, %s228
      %p235 = scmp.eq.s32.totalorder %s29, 1
      %p236 = por %p234, %p235
      %p237 = scmp.ne.s32.totalorder %s228, %s229
      %p238 = scmp.eq.s32.totalorder %s29, 0
      %p239 = por %p237, %p238
      %p240 = scmp.ne.s32.totalorder %s228, %s229
      %p241 = scmp.eq.s32.totalorder %s30, 1
      %p242 = por %p240, %p241
      %p244 = scmp.ne.s32.totalorder %s229, %s243
      %p245 = scmp.eq.s32.totalorder %s30, 0
      %p246 = por %p244, %p245
      %s247 = ssub.s32 %s24, %s31
      %p248 = scmp.eq.s32.totalorder %s247, 0
      %s250 = sadd.s32 %s249, 1
      %s251 = scalar_select %p248, %s249, %s250
      %p254 = pneg %p248
      %p255 = scmp.eq.s32.totalorder %s24, 1
      %p256 = por %p254, %p255
      %p257 = scmp.ne.s32.totalorder %s249, %s252
      %p258 = scmp.eq.s32.totalorder %s24, 0
      %p259 = por %p257, %p258
      %p260 = scmp.ne.s32.totalorder %s249, %s252
      %p261 = scmp.eq.s32.totalorder %s29, 1
      %p262 = por %p260, %p261
      %p263 = scmp.ne.s32.totalorder %s252, %s253
      %p264 = scmp.eq.s32.totalorder %s29, 0
      %p265 = por %p263, %p264
      %p266 = scmp.ne.s32.totalorder %s252, %s253
      %p267 = scmp.eq.s32.totalorder %s30, 1
      %p268 = por %p266, %p267
      %p270 = scmp.ne.s32.totalorder %s253, %s269
      %p271 = scmp.eq.s32.totalorder %s30, 0
      %p272 = por %p270, %p271
      %p273 = scmp.le.s32.totalorder 1, %s24
      %p274 = scmp.lt.s32.totalorder %s24, 3
      %p275 = pnand %p273, %p274
      %p276 = pneg %p275
      // Predicated region
      $region9: #{tpu_custom_call.1} parent=5 // pred_check
        _
      $region10: #{tpu_custom_call.1} parent=5 // pred_check_branch
        %278 = sbr.rel (%p275) target = $region12
      $region11: #{tpu_custom_call.1} parent=5 // pred_region
        %s279 = ssub.s32 %s24, 1
        // Predicated region
        $region13: #{tpu_custom_call.1} parent=11 // pred_check
          %p280 = pneg %p71
        $region14: #{tpu_custom_call.1} parent=11 // pred_check_branch
          %282 = sbr.rel (%p280) target = $region16
        $region15: #{tpu_custom_call.1} parent=11 // pred_region
          %s284 = ssub.s32 3072, 3072
          %285 = vsyncadd [#allocation7], %s284
          %s286 = sshll.u32 [#allocation6], 4
          %s287 = int_to_ptr.vmem [resolvable:$true] %s286
          %292 = dma.hbm_to_vmem [thread:$0]  %s1, 3072, %s287, [#allocation7], 64, 64, 4
        $region16: #{tpu_custom_call.1} parent=11 // pred_fallthru
          _
        // Predicated region
        $region17: #{tpu_custom_call.1} parent=11 // pred_check
          %p293 = pneg %p92
        $region18: #{tpu_custom_call.1} parent=11 // pred_check_branch
          %295 = sbr.rel (%p293) target = $region20
        $region19: #{tpu_custom_call.1} parent=11 // pred_region
          %s297 = ssub.s32 3072, 3072
          %298 = vsyncadd [#allocation7], %s297
          %s299 = sshll.u32 [#allocation8], 4
          %s300 = int_to_ptr.vmem [resolvable:$true] %s299
          %305 = dma.hbm_to_vmem [thread:$0]  %s2, 3072, %s300, [#allocation7], 64, 64, 4
        $region20: #{tpu_custom_call.1} parent=11 // pred_fallthru
          _
        // Predicated region
        $region21: #{tpu_custom_call.1} parent=11 // pred_check
          %p306 = pneg %p113
        $region22: #{tpu_custom_call.1} parent=11 // pred_check_branch
          %308 = sbr.rel (%p306) target = $region24
        $region23: #{tpu_custom_call.1} parent=11 // pred_region
          %s310 = ssub.s32 3072, 3072
          %311 = vsyncadd [#allocation10], %s310
          %s312 = sshll.u32 [#allocation9], 4
          %s313 = int_to_ptr.vmem [resolvable:$true] %s312
          %318 = dma.hbm_to_vmem [thread:$0]  %s3, 3072, %s313, [#allocation10], 64, 64, 4
        $region24: #{tpu_custom_call.1} parent=11 // pred_fallthru
          _
        // Predicated region
        $region25: #{tpu_custom_call.1} parent=11 // pred_check
          %p319 = pneg %p134
        $region26: #{tpu_custom_call.1} parent=11 // pred_check_branch
          %321 = sbr.rel (%p319) target = $region28
        $region27: #{tpu_custom_call.1} parent=11 // pred_region
          _
        $region28: #{tpu_custom_call.1} parent=11 // pred_fallthru
          _
        // Predicated region
        $region29: #{tpu_custom_call.1} parent=11 // pred_check
          %p322 = pneg %p155
        $region30: #{tpu_custom_call.1} parent=11 // pred_check_branch
          %324 = sbr.rel (%p322) target = $region32
        $region31: #{tpu_custom_call.1} parent=11 // pred_region
          _
        $region32: #{tpu_custom_call.1} parent=11 // pred_fallthru
          _
        // Predicated region
        $region33: #{tpu_custom_call.1} parent=11 // pred_check
          %p325 = pneg %p176
        $region34: #{tpu_custom_call.1} parent=11 // pred_check_branch
          %327 = sbr.rel (%p325) target = $region36
        $region35: #{tpu_custom_call.1} parent=11 // pred_region
          _
        $region36: #{tpu_custom_call.1} parent=11 // pred_fallthru
          _
        // Predicated region
        $region37: #{tpu_custom_call.1} parent=11 // pred_check
          %p328 = pneg %p197
        $region38: #{tpu_custom_call.1} parent=11 // pred_check_branch
          %330 = sbr.rel (%p328) target = $region40
        $region39: #{tpu_custom_call.1} parent=11 // pred_region
          _
        $region40: #{tpu_custom_call.1} parent=11 // pred_fallthru
          _
        // Predicated region
        $region41: #{tpu_custom_call.1} parent=11 // pred_check
          %p331 = pneg %p218
        $region42: #{tpu_custom_call.1} parent=11 // pred_check_branch
          %333 = sbr.rel (%p331) target = $region44
        $region43: #{tpu_custom_call.1} parent=11 // pred_region
          _
        $region44: #{tpu_custom_call.1} parent=11 // pred_fallthru
          _
        // Predicated region
        $region45: #{tpu_custom_call.1} parent=11 // pred_check
          %p334 = pneg %p239
        $region46: #{tpu_custom_call.1} parent=11 // pred_check_branch
          %336 = sbr.rel (%p334) target = $region48
        $region47: #{tpu_custom_call.1} parent=11 // pred_region
          _
        $region48: #{tpu_custom_call.1} parent=11 // pred_fallthru
          _
      $region12: #{tpu_custom_call.1} parent=5 // pred_fallthru
        _
      %p337 = scmp.lt.s32.totalorder %s24, 2
      // Predicated region
      $region49: #{tpu_custom_call.1} parent=5 // pred_check
        %p338 = pneg %p337
      $region50: #{tpu_custom_call.1} parent=5 // pred_check_branch
        %340 = sbr.rel (%p338) target = $region52
      $region51: #{tpu_custom_call.1} parent=5 // pred_region
        // Predicated region
        $region53: #{tpu_custom_call.1} parent=51 // pred_check
          %p341 = pneg %p44
        $region54: #{tpu_custom_call.1} parent=51 // pred_check_branch
          %343 = sbr.rel (%p341) target = $region56
        $region55: #{tpu_custom_call.1} parent=51 // pred_region
          %s344 = sand.u32 %s34, 1
          %s345 = scalar_lea.sflag [#allocation4], %s344
          %s346 = sand.u32 %s34, 1
          %s347 = smul.addr %s346, 16
          %s348 = scalar_lea.vmem [#allocation3], %s347
          %s350 = ssub.s32 256, 256
          %351 = vsyncadd %s345, %s350
          %s352 = smul.addr %s24, 2
          %s353 = smul.addr %s352, 128
          %s354 = scalar_lea.hbm %s0, %s353
          %s355 = sshll.u32 %s348, 4
          %s356 = int_to_ptr.vmem [resolvable:$true] %s355
          %361 = dma.hbm_to_vmem [thread:$0]  %s354, 256, %s356, %s345, 128, 128, 8
        $region56: #{tpu_custom_call.1} parent=51 // pred_fallthru
          _
      $region52: #{tpu_custom_call.1} parent=5 // pred_fallthru
        _
      %p362 = scmp.le.s32.totalorder 1, %s24
      %p363 = scmp.lt.s32.totalorder %s24, 3
      %p364 = pnand %p362, %p363
      %p365 = pneg %p364
      // Predicated region
      $region57: #{tpu_custom_call.1} parent=5 // pred_check
        _
      $region58: #{tpu_custom_call.1} parent=5 // pred_check_branch
        %367 = sbr.rel (%p364) target = $region60
      $region59: #{tpu_custom_call.1} parent=5 // pred_region
        %s368 = ssub.s32 %s24, 1
        %s369 = sand.u32 %s37, 1
        %s370 = scalar_lea.sflag [#allocation4], %s369
        %s371 = sand.u32 %s37, 1
        %s372 = smul.addr %s371, 16
        %s373 = scalar_lea.vmem [#allocation3], %s372
        // Predicated region
        $region61: #{tpu_custom_call.1} parent=59 // pred_check
          %p374 = pneg %p50
        $region62: #{tpu_custom_call.1} parent=59 // pred_check_branch
          %376 = sbr.rel (%p374) target = $region64
        $region63: #{tpu_custom_call.1} parent=59 // pred_region
          %377 = dma.done %s370, 256
        $region64: #{tpu_custom_call.1} parent=59 // pred_fallthru
          _
        // Predicated region
        $region65: #{tpu_custom_call.1} parent=59 // pred_check
          %p378 = pneg %p71
        $region66: #{tpu_custom_call.1} parent=59 // pred_check_branch
          %380 = sbr.rel (%p378) target = $region68
        $region67: #{tpu_custom_call.1} parent=59 // pred_region
          %381 = dma.done [#allocation7], 3072
        $region68: #{tpu_custom_call.1} parent=59 // pred_fallthru
          _
        // Predicated region
        $region69: #{tpu_custom_call.1} parent=59 // pred_check
          %p382 = pneg %p92
        $region70: #{tpu_custom_call.1} parent=59 // pred_check_branch
          %384 = sbr.rel (%p382) target = $region72
        $region71: #{tpu_custom_call.1} parent=59 // pred_region
          %385 = dma.done [#allocation7], 3072
        $region72: #{tpu_custom_call.1} parent=59 // pred_fallthru
          _
        // Predicated region
        $region73: #{tpu_custom_call.1} parent=59 // pred_check
          %p386 = pneg %p113
        $region74: #{tpu_custom_call.1} parent=59 // pred_check_branch
          %388 = sbr.rel (%p386) target = $region76
        $region75: #{tpu_custom_call.1} parent=59 // pred_region
          %389 = dma.done [#allocation10], 3072
        $region76: #{tpu_custom_call.1} parent=59 // pred_fallthru
          _
        %s390 = sand.u32 %s37, 1
        %s391 = scalar_lea.sflag [#allocation4], %s390
        %s392 = sand.u32 %s37, 1
        %s393 = smul.addr %s392, 16
        %s394 = scalar_lea.vmem [#allocation3], %s393
        %p395 = pneg %p50
        %p396 = pneg %p47
        %p397 = pneg %p71
        %p398 = pneg %p68
        %p399 = pneg %p92
        %p400 = pneg %p89
        %p401 = pneg %p113
        %p402 = pneg %p110
        %p403 = pneg %p134
        %p404 = pneg %p131
        %p405 = pneg %p155
        %p406 = pneg %p152
        %p407 = pneg %p176
        %p408 = pneg %p173
        %p409 = pneg %p197
        %p410 = pneg %p194
        %p411 = pneg %p218
        %p412 = pneg %p215
        %p413 = pneg %p239
        %p414 = pneg %p236
        %p415 = pneg %p265
        %p416 = pneg %p262
        %s417 = sand.u32 %s252, 1
        %s418 = scalar_lea.sflag [#allocation5], %s417
        %s419 = sand.u32 %s252, 1
        %s420 = smul.addr %s419, 16
        %s421 = scalar_lea.vmem [#allocation11], %s420
        %v423 = vld [vmem:[%s373] sm:$0xff]
        %v424 = vld [vmem:[%s373 + $0x8] sm:$0xff]
        %v425 = vld [vmem:[%s4] sm:$0x1]
        %v426 = vld [vmem:[%s5] sm:$0x1]
        %v427 = vld [vmem:[%s6] sm:$0x1]
        %v428 = vld [vmem:[%s7] sm:$0x1]
        %v429 = vld [vmem:[%s8] sm:$0x1]
        %v430 = vld [vmem:[%s9] sm:$0x1]
        %v431 = vld [vmem:[%s373] ss:$4 sm:$0xf]
        %s432 = scalar_lea.vmem %s373, 1 [#allocation3]
        %v433 = vld [vmem:[%s432] ss:$4 sm:$0xf]
        %v434 = vadd.f32 %v431, %v433
        %s435 = scalar_lea.vmem %s373, 2 [#allocation3]
        %v436 = vld [vmem:[%s435] ss:$4 sm:$0xf]
        %v437 = vadd.f32 %v434, %v436
        %s438 = scalar_lea.vmem %s373, 3 [#allocation3]
        %v439 = vld [vmem:[%s438] ss:$4 sm:$0xf]
        %v440 = vadd.f32 %v437, %v439
        %v441 = vmul.f32 %v440, 0.25
        %v442 = vpack.c.bf16 %v441, %v441
        %v443 = vld [vmem:[#allocation6] sm:$0xf]
        %v444 = vld [vmem:[#allocation6 + $0x4] sm:$0xf]
        %v445 = vld [vmem:[#allocation6 + $0x8] sm:$0xf]
        %v446 = vld [vmem:[#allocation6 + $0xc] sm:$0xf]
        %v447 = vld [vmem:[#allocation6 + $0x10] sm:$0xf]
        %v448 = vld [vmem:[#allocation6 + $0x14] sm:$0xf]
        %v449 = vld [vmem:[#allocation6 + $0x18] sm:$0xf]
        %v450 = vld [vmem:[#allocation6 + $0x1c] sm:$0xf]
        %v451 = vld [vmem:[#allocation6 + $0x20] sm:$0xf]
        %v452 = vld [vmem:[#allocation6 + $0x24] sm:$0xf]
        %v453 = vld [vmem:[#allocation6 + $0x28] sm:$0xf]
        %v454 = vld [vmem:[#allocation6 + $0x2c] sm:$0xf]
        %v455 = vld [vmem:[#allocation6 + $0x30] sm:$0xf]
        %v456 = vld [vmem:[#allocation6 + $0x34] sm:$0xf]
        %v457 = vld [vmem:[#allocation6 + $0x38] sm:$0xf]
        %v458 = vld [vmem:[#allocation6 + $0x3c] sm:$0xf]
        %v475 = vunpack.c.l.b16 %v443
        %v476 = vunpack.c.l.b16 %v444
        %v477 = vunpack.c.l.b16 %v445
        %v478 = vunpack.c.l.b16 %v446
        %v479 = vunpack.c.l.b16 %v447
        %v480 = vunpack.c.l.b16 %v448
        %v481 = vunpack.c.l.b16 %v449
        %v482 = vunpack.c.l.b16 %v450
        %v483 = vunpack.c.l.b16 %v451
        %v484 = vunpack.c.l.b16 %v452
        %v485 = vunpack.c.l.b16 %v453
        %v486 = vunpack.c.l.b16 %v454
        %v487 = vunpack.c.l.b16 %v455
        %v488 = vunpack.c.l.b16 %v456
        %v489 = vunpack.c.l.b16 %v457
        %v490 = vunpack.c.l.b16 %v458
        %v491 = vpack.c.b16 %v476, %v475
        %v492 = vpack.c.b16 %v478, %v477
        %v493 = vpack.c.b16 %v480, %v479
        %v494 = vpack.c.b16 %v482, %v481
        %v495 = vpack.c.b16 %v484, %v483
        %v496 = vpack.c.b16 %v486, %v485
        %v497 = vpack.c.b16 %v488, %v487
        %v498 = vpack.c.b16 %v490, %v489
        %507 = vmatprep.subr.bf16.mxu0 0
        %508 = vmatpush1.bf16.msra.mxu0 %v498
        %509 = vmatprep.subr.bf16.mxu0 0
        %510 = vmatpush1.bf16.msra.mxu0 %v497
        %511 = vmatprep.subr.bf16.mxu0 0
        %512 = vmatpush1.bf16.msra.mxu0 %v496
        %513 = vmatprep.subr.bf16.mxu0 0
        %514 = vmatpush1.bf16.msra.mxu0 %v495
        %515 = vmatprep.subr.bf16.mxu0 0
        %516 = vmatpush1.bf16.msra.mxu0 %v494
        %517 = vmatprep.subr.bf16.mxu0 0
        %518 = vmatpush1.bf16.msra.mxu0 %v493
        %519 = vmatprep.subr.bf16.mxu0 0
        %520 = vmatpush1.bf16.msra.mxu0 %v492
        %521 = vmatprep.subr.bf16.mxu0 0
        %522 = vmatpush1.bf16.msra.mxu0 %v491
        %523 = vmatprep.subr.bf16.mxu0 0
        %524 = vmatpush2.bf16.msra.mxu0 0
        %525 = vmatprep.subr.bf16.mxu0 0
        %526 = vmatpush2.bf16.msra.mxu0 0
        %527 = vmatprep.subr.bf16.mxu0 0
        %528 = vmatpush2.bf16.msra.mxu0 0
        %529 = vmatprep.subr.bf16.mxu0 0
        %530 = vmatpush2.bf16.msra.mxu0 0
        %531 = vmatprep.subr.bf16.mxu0 0
        %532 = vmatpush2.bf16.msra.mxu0 0
        %533 = vmatprep.subr.bf16.mxu0 0
        %534 = vmatpush2.bf16.msra.mxu0 0
        %535 = vmatprep.subr.bf16.mxu0 0
        %536 = vmatpush2.bf16.msra.mxu0 0
        %537 = vmatprep.subr.bf16.mxu0 0
        %538 = vmatpush2.bf16.msra.mxu0 0
        %539 = vmatprep.mubr.bf16.mxu0 0
        %540 = vmatmul.mubr.bf16.gmra.mxu0 %v442
        %v541 = vpop.f32.mrf.mxu0
        %v542 = vadd.f32 0.0, %v541
        %v543 = vpop.f32.mrf.mxu0
        %v544 = vpop.f32.mrf.mxu0
        %v545 = vpop.f32.mrf.mxu0
        %546 = vdwg.mxu0
        %s547 = scalar_lea.vmem [#allocation6], 64
        %v548 = vld [vmem:[%s547] sm:$0xf]
        %v549 = vld [vmem:[%s547 + $0x4] sm:$0xf]
        %v550 = vld [vmem:[%s547 + $0x8] sm:$0xf]
        %v551 = vld [vmem:[%s547 + $0xc] sm:$0xf]
        %v552 = vld [vmem:[%s547 + $0x10] sm:$0xf]
        %v553 = vld [vmem:[%s547 + $0x14] sm:$0xf]
        %v554 = vld [vmem:[%s547 + $0x18] sm:$0xf]
        %v555 = vld [vmem:[%s547 + $0x1c] sm:$0xf]
        %v556 = vld [vmem:[%s547 + $0x20] sm:$0xf]
        %v557 = vld [vmem:[%s547 + $0x24] sm:$0xf]
        %v558 = vld [vmem:[%s547 + $0x28] sm:$0xf]
        %v559 = vld [vmem:[%s547 + $0x2c] sm:$0xf]
        %v560 = vld [vmem:[%s547 + $0x30] sm:$0xf]
        %v561 = vld [vmem:[%s547 + $0x34] sm:$0xf]
        %v562 = vld [vmem:[%s547 + $0x38] sm:$0xf]
        %v563 = vld [vmem:[%s547 + $0x3c] sm:$0xf]
        %s564 = scalar_lea.vmem [#allocation6], 128
        %v565 = vld [vmem:[%s564] sm:$0xf]
        %v566 = vld [vmem:[%s564 + $0x4] sm:$0xf]
        %v567 = vld [vmem:[%s564 + $0x8] sm:$0xf]
        %v568 = vld [vmem:[%s564 + $0xc] sm:$0xf]
        %v569 = vld [vmem:[%s564 + $0x10] sm:$0xf]
        %v570 = vld [vmem:[%s564 + $0x14] sm:$0xf]
        %v571 = vld [vmem:[%s564 + $0x18] sm:$0xf]
        %v572 = vld [vmem:[%s564 + $0x1c] sm:$0xf]
        %v573 = vld [vmem:[%s564 + $0x20] sm:$0xf]
        %v574 = vld [vmem:[%s564 + $0x24] sm:$0xf]
        %v575 = vld [vmem:[%s564 + $0x28] sm:$0xf]
        %v576 = vld [vmem:[%s564 + $0x2c] sm:$0xf]
        %v577 = vld [vmem:[%s564 + $0x30] sm:$0xf]
        %v578 = vld [vmem:[%s564 + $0x34] sm:$0xf]
        %v579 = vld [vmem:[%s564 + $0x38] sm:$0xf]
        %v580 = vld [vmem:[%s564 + $0x3c] sm:$0xf]
        %v597 = vunpack.c.l.b16 %v565
        %v598 = vunpack.c.l.b16 %v566
        %v599 = vunpack.c.l.b16 %v567
        %v600 = vunpack.c.l.b16 %v568
        %v601 = vunpack.c.l.b16 %v569
        %v602 = vunpack.c.l.b16 %v570
        %v603 = vunpack.c.l.b16 %v571
        %v604 = vunpack.c.l.b16 %v572
        %v605 = vunpack.c.l.b16 %v573
        %v606 = vunpack.c.l.b16 %v574
        %v607 = vunpack.c.l.b16 %v575
        %v608 = vunpack.c.l.b16 %v576
        %v609 = vunpack.c.l.b16 %v577
        %v610 = vunpack.c.l.b16 %v578
        %v611 = vunpack.c.l.b16 %v579
        %v612 = vunpack.c.l.b16 %v580
        %v613 = vpack.c.b16 %v598, %v597
        %v614 = vpack.c.b16 %v600, %v599
        %v615 = vpack.c.b16 %v602, %v601
        %v616 = vpack.c.b16 %v604, %v603
        %v617 = vpack.c.b16 %v606, %v605
        %v618 = vpack.c.b16 %v608, %v607
        %v619 = vpack.c.b16 %v610, %v609
        %v620 = vpack.c.b16 %v612, %v611
        %629 = vmatprep.subr.bf16.mxu0 0
        %630 = vmatpush1.bf16.msra.mxu0 %v620
        %631 = vmatprep.subr.bf16.mxu0 0
        %632 = vmatpush1.bf16.msra.mxu0 %v619
        %633 = vmatprep.subr.bf16.mxu0 0
        %634 = vmatpush1.bf16.msra.mxu0 %v618
        %635 = vmatprep.subr.bf16.mxu0 0
        %636 = vmatpush1.bf16.msra.mxu0 %v617
        %637 = vmatprep.subr.bf16.mxu0 0
        %638 = vmatpush1.bf16.msra.mxu0 %v616
        %639 = vmatprep.subr.bf16.mxu0 0
        %640 = vmatpush1.bf16.msra.mxu0 %v615
        %641 = vmatprep.subr.bf16.mxu0 0
        %642 = vmatpush1.bf16.msra.mxu0 %v614
        %643 = vmatprep.subr.bf16.mxu0 0
        %644 = vmatpush1.bf16.msra.mxu0 %v613
        %645 = vmatprep.subr.bf16.mxu0 0
        %646 = vmatpush2.bf16.msra.mxu0 0
        %647 = vmatprep.subr.bf16.mxu0 0
        %648 = vmatpush2.bf16.msra.mxu0 0
        %649 = vmatprep.subr.bf16.mxu0 0
        %650 = vmatpush2.bf16.msra.mxu0 0
        %651 = vmatprep.subr.bf16.mxu0 0
        %652 = vmatpush2.bf16.msra.mxu0 0
        %653 = vmatprep.subr.bf16.mxu0 0
        %654 = vmatpush2.bf16.msra.mxu0 0
        %655 = vmatprep.subr.bf16.mxu0 0
        %656 = vmatpush2.bf16.msra.mxu0 0
        %657 = vmatprep.subr.bf16.mxu0 0
        %658 = vmatpush2.bf16.msra.mxu0 0
        %659 = vmatprep.subr.bf16.mxu0 0
        %660 = vmatpush2.bf16.msra.mxu0 0
        %661 = vmatprep.mubr.bf16.mxu0 0
        %662 = vmatmul.mubr.bf16.gmra.mxu0 %v442
        %v663 = vpop.f32.mrf.mxu0
        %v664 = vadd.f32 0.0, %v663
        %v665 = vpop.f32.mrf.mxu0
        %v666 = vpop.f32.mrf.mxu0
        %v667 = vpop.f32.mrf.mxu0
        %668 = vdwg.mxu0
        %v670 = vrot.slane %v542, 7
        %vm672 = vcmask 1040384
        %v673 = vsel %vm672, 0.0, %v670
        %v690 = vunpack.c.l.b16 %v548
        %v691 = vunpack.c.l.b16 %v549
        %v692 = vunpack.c.l.b16 %v550
        %v693 = vunpack.c.l.b16 %v551
        %v694 = vunpack.c.l.b16 %v552
        %v695 = vunpack.c.l.b16 %v553
        %v696 = vunpack.c.l.b16 %v554
        %v697 = vunpack.c.l.b16 %v555
        %v698 = vunpack.c.l.b16 %v556
        %v699 = vunpack.c.l.b16 %v557
        %v700 = vunpack.c.l.b16 %v558
        %v701 = vunpack.c.l.b16 %v559
        %v702 = vunpack.c.l.b16 %v560
        %v703 = vunpack.c.l.b16 %v561
        %v704 = vunpack.c.l.b16 %v562
        %v705 = vunpack.c.l.b16 %v563
        %v706 = vpack.c.b16 %v691, %v690
        %v707 = vpack.c.b16 %v693, %v692
        %v708 = vpack.c.b16 %v695, %v694
        %v709 = vpack.c.b16 %v697, %v696
        %v710 = vpack.c.b16 %v699, %v698
        %v711 = vpack.c.b16 %v701, %v700
        %v712 = vpack.c.b16 %v703, %v702
        %v713 = vpack.c.b16 %v705, %v704
        %722 = vmatprep.subr.bf16.mxu0 0
        %723 = vmatpush1.bf16.msra.mxu0 %v713
        %724 = vmatprep.subr.bf16.mxu0 0
        %725 = vmatpush1.bf16.msra.mxu0 %v712
        %726 = vmatprep.subr.bf16.mxu0 0
        %727 = vmatpush1.bf16.msra.mxu0 %v711
        %728 = vmatprep.subr.bf16.mxu0 0
        %729 = vmatpush1.bf16.msra.mxu0 %v710
        %730 = vmatprep.subr.bf16.mxu0 0
        %731 = vmatpush1.bf16.msra.mxu0 %v709
        %732 = vmatprep.subr.bf16.mxu0 0
        %733 = vmatpush1.bf16.msra.mxu0 %v708
        %734 = vmatprep.subr.bf16.mxu0 0
        %735 = vmatpush1.bf16.msra.mxu0 %v707
        %736 = vmatprep.subr.bf16.mxu0 0
        %737 = vmatpush1.bf16.msra.mxu0 %v706
        %738 = vmatprep.subr.bf16.mxu0 0
        %739 = vmatpush2.bf16.msra.mxu0 0
        %740 = vmatprep.subr.bf16.mxu0 0
        %741 = vmatpush2.bf16.msra.mxu0 0
        %742 = vmatprep.subr.bf16.mxu0 0
        %743 = vmatpush2.bf16.msra.mxu0 0
        %744 = vmatprep.subr.bf16.mxu0 0
        %745 = vmatpush2.bf16.msra.mxu0 0
        %746 = vmatprep.subr.bf16.mxu0 0
        %747 = vmatpush2.bf16.msra.mxu0 0
        %748 = vmatprep.subr.bf16.mxu0 0
        %749 = vmatpush2.bf16.msra.mxu0 0
        %750 = vmatprep.subr.bf16.mxu0 0
        %751 = vmatpush2.bf16.msra.mxu0 0
        %752 = vmatprep.subr.bf16.mxu0 0
        %753 = vmatpush2.bf16.msra.mxu0 0
        %754 = vmatprep.mubr.bf16.mxu0 0
        %755 = vmatmul.mubr.bf16.gmra.mxu0 %v442
        %v756 = vpop.f32.mrf.mxu0
        %v757 = vadd.f32 %v673, %v756
        %v758 = vpop.f32.mrf.mxu0
        %v759 = vpop.f32.mrf.mxu0
        %v760 = vpop.f32.mrf.mxu0
        %761 = vdwg.mxu0
        %v763 = vrot.slane %v664, 1
        %vm765 = vcmask 1042432
        %v766 = vsel %vm765, %v763, 0.0
        %v767 = vadd.f32 %v757, %v766
        %v769 = vlaneseq
        %v770 = vshrl.u32 %v769, 7
        %v771 = vsub.s32 0, %v770
        %v772 = vrot.slane %v425, %v771
        %v774 = vmul.f32 %v767, %v772
        %v776 = vlaneseq
        %v777 = vshrl.u32 %v776, 7
        %v778 = vsub.s32 0, %v777
        %v779 = vrot.slane %v426, %v778
        %v781 = vadd.f32 %v774, %v779
        %782 = vst [vmem:[#allocation2] ss:$4 sm:$0xf] %v781
        %s783 = scalar_lea.vmem [#allocation2], 1
        %784 = vst [vmem:[%s783] ss:$4 sm:$0xf] %v781
        %s785 = scalar_lea.vmem [#allocation2], 2
        %786 = vst [vmem:[%s785] ss:$4 sm:$0xf] %v781
        %s787 = scalar_lea.vmem [#allocation2], 3
        %788 = vst [vmem:[%s787] ss:$4 sm:$0xf] %v781
        %v789 = vld [vmem:[#allocation2] sm:$0xff]
        %v790 = vld [vmem:[#allocation2 + $0x8] sm:$0xff]
        %v791 = vadd.f32 %v423, %v789
        %v792 = vadd.f32 %v424, %v790
        %v793 = vxor.u32 %v791, 2147483648
        %v794 = vxor.u32 %v792, 2147483648
        %v795 = vmul.f32 %v793, 1.442695
        %v796 = vpow.pop %v795
        %v797 = vmul.f32 %v794, 1.442695
        %v798 = vpow.pop %v797
        %v799 = vadd.f32 %v796, 1.0
        %v800 = vadd.f32 %v798, 1.0
        %v801 = vrcp.pop %v799
        %v802 = vmul.f32 1.0, %v801
        %v803 = vrcp.pop %v800
        %v804 = vmul.f32 1.0, %v803
        %v805 = vpack.c.bf16 %v424, %v423
        %v806 = vld [vmem:[#allocation8] sm:$0xf]
        %v807 = vld [vmem:[#allocation8 + $0x4] sm:$0xf]
        %v808 = vld [vmem:[#allocation8 + $0x8] sm:$0xf]
        %v809 = vld [vmem:[#allocation8 + $0xc] sm:$0xf]
        %v810 = vld [vmem:[#allocation8 + $0x10] sm:$0xf]
        %v811 = vld [vmem:[#allocation8 + $0x14] sm:$0xf]
        %v812 = vld [vmem:[#allocation8 + $0x18] sm:$0xf]
        %v813 = vld [vmem:[#allocation8 + $0x1c] sm:$0xf]
        %v814 = vld [vmem:[#allocation8 + $0x20] sm:$0xf]
        %v815 = vld [vmem:[#allocation8 + $0x24] sm:$0xf]
        %v816 = vld [vmem:[#allocation8 + $0x28] sm:$0xf]
        %v817 = vld [vmem:[#allocation8 + $0x2c] sm:$0xf]
        %v818 = vld [vmem:[#allocation8 + $0x30] sm:$0xf]
        %v819 = vld [vmem:[#allocation8 + $0x34] sm:$0xf]
        %v820 = vld [vmem:[#allocation8 + $0x38] sm:$0xf]
        %v821 = vld [vmem:[#allocation8 + $0x3c] sm:$0xf]
        %v838 = vunpack.c.l.b16 %v806
        %v839 = vunpack.c.l.b16 %v807
        %v840 = vunpack.c.l.b16 %v808
        %v841 = vunpack.c.l.b16 %v809
        %v842 = vunpack.c.l.b16 %v810
        %v843 = vunpack.c.l.b16 %v811
        %v844 = vunpack.c.l.b16 %v812
        %v845 = vunpack.c.l.b16 %v813
        %v846 = vunpack.c.l.b16 %v814
        %v847 = vunpack.c.l.b16 %v815
        %v848 = vunpack.c.l.b16 %v816
        %v849 = vunpack.c.l.b16 %v817
        %v850 = vunpack.c.l.b16 %v818
        %v851 = vunpack.c.l.b16 %v819
        %v852 = vunpack.c.l.b16 %v820
        %v853 = vunpack.c.l.b16 %v821
        %v854 = vpack.c.b16 %v839, %v838
        %v855 = vpack.c.b16 %v841, %v840
        %v856 = vpack.c.b16 %v843, %v842
        %v857 = vpack.c.b16 %v845, %v844
        %v858 = vpack.c.b16 %v847, %v846
        %v859 = vpack.c.b16 %v849, %v848
        %v860 = vpack.c.b16 %v851, %v850
        %v861 = vpack.c.b16 %v853, %v852
        %870 = vmatprep.subr.bf16.mxu0 0
        %871 = vmatpush1.bf16.msra.mxu0 %v861
        %872 = vmatprep.subr.bf16.mxu0 0
        %873 = vmatpush1.bf16.msra.mxu0 %v860
        %874 = vmatprep.subr.bf16.mxu0 0
        %875 = vmatpush1.bf16.msra.mxu0 %v859
        %876 = vmatprep.subr.bf16.mxu0 0
        %877 = vmatpush1.bf16.msra.mxu0 %v858
        %878 = vmatprep.subr.bf16.mxu0 0
        %879 = vmatpush1.bf16.msra.mxu0 %v857
        %880 = vmatprep.subr.bf16.mxu0 0
        %881 = vmatpush1.bf16.msra.mxu0 %v856
        %882 = vmatprep.subr.bf16.mxu0 0
        %883 = vmatpush1.bf16.msra.mxu0 %v855
        %884 = vmatprep.subr.bf16.mxu0 0
        %885 = vmatpush1.bf16.msra.mxu0 %v854
        %886 = vmatprep.subr.bf16.mxu0 0
        %887 = vmatpush2.bf16.msra.mxu0 0
        %888 = vmatprep.subr.bf16.mxu0 0
        %889 = vmatpush2.bf16.msra.mxu0 0
        %890 = vmatprep.subr.bf16.mxu0 0
        %891 = vmatpush2.bf16.msra.mxu0 0
        %892 = vmatprep.subr.bf16.mxu0 0
        %893 = vmatpush2.bf16.msra.mxu0 0
        %894 = vmatprep.subr.bf16.mxu0 0
        %895 = vmatpush2.bf16.msra.mxu0 0
        %896 = vmatprep.subr.bf16.mxu0 0
        %897 = vmatpush2.bf16.msra.mxu0 0
        %898 = vmatprep.subr.bf16.mxu0 0
        %899 = vmatpush2.bf16.msra.mxu0 0
        %900 = vmatprep.subr.bf16.mxu0 0
        %901 = vmatpush2.bf16.msra.mxu0 0
        %902 = vmatprep.mubr.bf16.mxu0 0
        %903 = vmatmul.mubr.bf16.gmra.mxu0 %v805
        %v904 = vpop.f32.mrf.mxu0
        %v905 = vadd.f32 0.0, %v904
        %v906 = vpop.f32.mrf.mxu0
        %v907 = vpop.f32.mrf.mxu0
        %v908 = vadd.f32 0.0, %v907
        %v909 = vpop.f32.mrf.mxu0
        %910 = vdwg.mxu0
        %s911 = scalar_lea.vmem [#allocation8], 64
        %v912 = vld [vmem:[%s911] sm:$0xf]
        %v913 = vld [vmem:[%s911 + $0x4] sm:$0xf]
        %v914 = vld [vmem:[%s911 + $0x8] sm:$0xf]
        %v915 = vld [vmem:[%s911 + $0xc] sm:$0xf]
        %v916 = vld [vmem:[%s911 + $0x10] sm:$0xf]
        %v917 = vld [vmem:[%s911 + $0x14] sm:$0xf]
        %v918 = vld [vmem:[%s911 + $0x18] sm:$0xf]
        %v919 = vld [vmem:[%s911 + $0x1c] sm:$0xf]
        %v920 = vld [vmem:[%s911 + $0x20] sm:$0xf]
        %v921 = vld [vmem:[%s911 + $0x24] sm:$0xf]
        %v922 = vld [vmem:[%s911 + $0x28] sm:$0xf]
        %v923 = vld [vmem:[%s911 + $0x2c] sm:$0xf]
        %v924 = vld [vmem:[%s911 + $0x30] sm:$0xf]
        %v925 = vld [vmem:[%s911 + $0x34] sm:$0xf]
        %v926 = vld [vmem:[%s911 + $0x38] sm:$0xf]
        %v927 = vld [vmem:[%s911 + $0x3c] sm:$0xf]
        %s928 = scalar_lea.vmem [#allocation8], 128
        %v929 = vld [vmem:[%s928] sm:$0xf]
        %v930 = vld [vmem:[%s928 + $0x4] sm:$0xf]
        %v931 = vld [vmem:[%s928 + $0x8] sm:$0xf]
        %v932 = vld [vmem:[%s928 + $0xc] sm:$0xf]
        %v933 = vld [vmem:[%s928 + $0x10] sm:$0xf]
        %v934 = vld [vmem:[%s928 + $0x14] sm:$0xf]
        %v935 = vld [vmem:[%s928 + $0x18] sm:$0xf]
        %v936 = vld [vmem:[%s928 + $0x1c] sm:$0xf]
        %v937 = vld [vmem:[%s928 + $0x20] sm:$0xf]
        %v938 = vld [vmem:[%s928 + $0x24] sm:$0xf]
        %v939 = vld [vmem:[%s928 + $0x28] sm:$0xf]
        %v940 = vld [vmem:[%s928 + $0x2c] sm:$0xf]
        %v941 = vld [vmem:[%s928 + $0x30] sm:$0xf]
        %v942 = vld [vmem:[%s928 + $0x34] sm:$0xf]
        %v943 = vld [vmem:[%s928 + $0x38] sm:$0xf]
        %v944 = vld [vmem:[%s928 + $0x3c] sm:$0xf]
        %v961 = vunpack.c.l.b16 %v929
        %v962 = vunpack.c.l.b16 %v930
        %v963 = vunpack.c.l.b16 %v931
        %v964 = vunpack.c.l.b16 %v932
        %v965 = vunpack.c.l.b16 %v933
        %v966 = vunpack.c.l.b16 %v934
        %v967 = vunpack.c.l.b16 %v935
        %v968 = vunpack.c.l.b16 %v936
        %v969 = vunpack.c.l.b16 %v937
        %v970 = vunpack.c.l.b16 %v938
        %v971 = vunpack.c.l.b16 %v939
        %v972 = vunpack.c.l.b16 %v940
        %v973 = vunpack.c.l.b16 %v941
        %v974 = vunpack.c.l.b16 %v942
        %v975 = vunpack.c.l.b16 %v943
        %v976 = vunpack.c.l.b16 %v944
        %v977 = vpack.c.b16 %v962, %v961
        %v978 = vpack.c.b16 %v964, %v963
        %v979 = vpack.c.b16 %v966, %v965
        %v980 = vpack.c.b16 %v968, %v967
        %v981 = vpack.c.b16 %v970, %v969
        %v982 = vpack.c.b16 %v972, %v971
        %v983 = vpack.c.b16 %v974, %v973
        %v984 = vpack.c.b16 %v976, %v975
        %993 = vmatprep.subr.bf16.mxu0 0
        %994 = vmatpush1.bf16.msra.mxu0 %v984
        %995 = vmatprep.subr.bf16.mxu0 0
        %996 = vmatpush1.bf16.msra.mxu0 %v983
        %997 = vmatprep.subr.bf16.mxu0 0
        %998 = vmatpush1.bf16.msra.mxu0 %v982
        %999 = vmatprep.subr.bf16.mxu0 0
        %1000 = vmatpush1.bf16.msra.mxu0 %v981
        %1001 = vmatprep.subr.bf16.mxu0 0
        %1002 = vmatpush1.bf16.msra.mxu0 %v980
        %1003 = vmatprep.subr.bf16.mxu0 0
        %1004 = vmatpush1.bf16.msra.mxu0 %v979
        %1005 = vmatprep.subr.bf16.mxu0 0
        %1006 = vmatpush1.bf16.msra.mxu0 %v978
        %1007 = vmatprep.subr.bf16.mxu0 0
        %1008 = vmatpush1.bf16.msra.mxu0 %v977
        %1009 = vmatprep.subr.bf16.mxu0 0
        %1010 = vmatpush2.bf16.msra.mxu0 0
        %1011 = vmatprep.subr.bf16.mxu0 0
        %1012 = vmatpush2.bf16.msra.mxu0 0
        %1013 = vmatprep.subr.bf16.mxu0 0
        %1014 = vmatpush2.bf16.msra.mxu0 0
        %1015 = vmatprep.subr.bf16.mxu0 0
        %1016 = vmatpush2.bf16.msra.mxu0 0
        %1017 = vmatprep.subr.bf16.mxu0 0
        %1018 = vmatpush2.bf16.msra.mxu0 0
        %1019 = vmatprep.subr.bf16.mxu0 0
        %1020 = vmatpush2.bf16.msra.mxu0 0
        %1021 = vmatprep.subr.bf16.mxu0 0
        %1022 = vmatpush2.bf16.msra.mxu0 0
        %1023 = vmatprep.subr.bf16.mxu0 0
        %1024 = vmatpush2.bf16.msra.mxu0 0
        %1025 = vmatprep.mubr.bf16.mxu0 0
        %1026 = vmatmul.mubr.bf16.gmra.mxu0 %v805
        %v1027 = vpop.f32.mrf.mxu0
        %v1028 = vadd.f32 0.0, %v1027
        %v1029 = vpop.f32.mrf.mxu0
        %v1030 = vpop.f32.mrf.mxu0
        %v1031 = vadd.f32 0.0, %v1030
        %v1032 = vpop.f32.mrf.mxu0
        %1033 = vdwg.mxu0
        %v1036 = vrot.slane %v905, 7
        %v1037 = vrot.slane %v908, 7
        %v1038 = vsel %vm672, %v1036, %v1037
        %v1041 = vsel %vm672, 0.0, %v1036
        %v1058 = vunpack.c.l.b16 %v912
        %v1059 = vunpack.c.l.b16 %v913
        %v1060 = vunpack.c.l.b16 %v914
        %v1061 = vunpack.c.l.b16 %v915
        %v1062 = vunpack.c.l.b16 %v916
        %v1063 = vunpack.c.l.b16 %v917
        %v1064 = vunpack.c.l.b16 %v918
        %v1065 = vunpack.c.l.b16 %v919
        %v1066 = vunpack.c.l.b16 %v920
        %v1067 = vunpack.c.l.b16 %v921
        %v1068 = vunpack.c.l.b16 %v922
        %v1069 = vunpack.c.l.b16 %v923
        %v1070 = vunpack.c.l.b16 %v924
        %v1071 = vunpack.c.l.b16 %v925
        %v1072 = vunpack.c.l.b16 %v926
        %v1073 = vunpack.c.l.b16 %v927
        %v1074 = vpack.c.b16 %v1059, %v1058
        %v1075 = vpack.c.b16 %v1061, %v1060
        %v1076 = vpack.c.b16 %v1063, %v1062
        %v1077 = vpack.c.b16 %v1065, %v1064
        %v1078 = vpack.c.b16 %v1067, %v1066
        %v1079 = vpack.c.b16 %v1069, %v1068
        %v1080 = vpack.c.b16 %v1071, %v1070
        %v1081 = vpack.c.b16 %v1073, %v1072
        %1090 = vmatprep.subr.bf16.mxu0 0
        %1091 = vmatpush1.bf16.msra.mxu0 %v1081
        %1092 = vmatprep.subr.bf16.mxu0 0
        %1093 = vmatpush1.bf16.msra.mxu0 %v1080
        %1094 = vmatprep.subr.bf16.mxu0 0
        %1095 = vmatpush1.bf16.msra.mxu0 %v1079
        %1096 = vmatprep.subr.bf16.mxu0 0
        %1097 = vmatpush1.bf16.msra.mxu0 %v1078
        %1098 = vmatprep.subr.bf16.mxu0 0
        %1099 = vmatpush1.bf16.msra.mxu0 %v1077
        %1100 = vmatprep.subr.bf16.mxu0 0
        %1101 = vmatpush1.bf16.msra.mxu0 %v1076
        %1102 = vmatprep.subr.bf16.mxu0 0
        %1103 = vmatpush1.bf16.msra.mxu0 %v1075
        %1104 = vmatprep.subr.bf16.mxu0 0
        %1105 = vmatpush1.bf16.msra.mxu0 %v1074
        %1106 = vmatprep.subr.bf16.mxu0 0
        %1107 = vmatpush2.bf16.msra.mxu0 0
        %1108 = vmatprep.subr.bf16.mxu0 0
        %1109 = vmatpush2.bf16.msra.mxu0 0
        %1110 = vmatprep.subr.bf16.mxu0 0
        %1111 = vmatpush2.bf16.msra.mxu0 0
        %1112 = vmatprep.subr.bf16.mxu0 0
        %1113 = vmatpush2.bf16.msra.mxu0 0
        %1114 = vmatprep.subr.bf16.mxu0 0
        %1115 = vmatpush2.bf16.msra.mxu0 0
        %1116 = vmatprep.subr.bf16.mxu0 0
        %1117 = vmatpush2.bf16.msra.mxu0 0
        %1118 = vmatprep.subr.bf16.mxu0 0
        %1119 = vmatpush2.bf16.msra.mxu0 0
        %1120 = vmatprep.subr.bf16.mxu0 0
        %1121 = vmatpush2.bf16.msra.mxu0 0
        %1122 = vmatprep.mubr.bf16.mxu0 0
        %1123 = vmatmul.mubr.bf16.gmra.mxu0 %v805
        %v1124 = vpop.f32.mrf.mxu0
        %v1125 = vadd.f32 %v1041, %v1124
        %v1126 = vpop.f32.mrf.mxu0
        %v1127 = vpop.f32.mrf.mxu0
        %v1128 = vadd.f32 %v1038, %v1127
        %v1129 = vpop.f32.mrf.mxu0
        %1130 = vdwg.mxu0
        %vm1133 = vcmask 1046528
        %v1134 = vrot.slane %v1028, 1
        %v1135 = vrot.slane %v1031, 1
        %v1136 = vsel %vm1133, %v1134, %v1135
        %v1139 = vsel %vm1133, %v1135, 0.0
        %v1140 = vadd.f32 %v1125, %v1136
        %v1141 = vadd.f32 %v1128, %v1139
        %v1143 = vlaneseq
        %v1144 = vshrl.u32 %v1143, 7
        %v1145 = vsub.s32 0, %v1144
        %v1146 = vrot.slane %v427, %v1145
        %v1148 = vmul.f32 %v1140, %v1146
        %v1149 = vmul.f32 %v1141, %v1146
        %v1151 = vlaneseq
        %v1152 = vshrl.u32 %v1151, 7
        %v1153 = vsub.s32 0, %v1152
        %v1154 = vrot.slane %v428, %v1153
        %v1156 = vadd.f32 %v1148, %v1154
        %v1157 = vadd.f32 %v1149, %v1154
        %v1158 = vmul.f32 %v1156, %v802
        %v1159 = vmul.f32 %v1157, %v804
        %v1160 = vpack.c.bf16 %v1159, %v1158
        %v1161 = vld [vmem:[#allocation9] sm:$0xf]
        %v1162 = vld [vmem:[#allocation9 + $0x4] sm:$0xf]
        %v1163 = vld [vmem:[#allocation9 + $0x8] sm:$0xf]
        %v1164 = vld [vmem:[#allocation9 + $0xc] sm:$0xf]
        %v1165 = vld [vmem:[#allocation9 + $0x10] sm:$0xf]
        %v1166 = vld [vmem:[#allocation9 + $0x14] sm:$0xf]
        %v1167 = vld [vmem:[#allocation9 + $0x18] sm:$0xf]
        %v1168 = vld [vmem:[#allocation9 + $0x1c] sm:$0xf]
        %v1169 = vld [vmem:[#allocation9 + $0x20] sm:$0xf]
        %v1170 = vld [vmem:[#allocation9 + $0x24] sm:$0xf]
        %v1171 = vld [vmem:[#allocation9 + $0x28] sm:$0xf]
        %v1172 = vld [vmem:[#allocation9 + $0x2c] sm:$0xf]
        %v1173 = vld [vmem:[#allocation9 + $0x30] sm:$0xf]
        %v1174 = vld [vmem:[#allocation9 + $0x34] sm:$0xf]
        %v1175 = vld [vmem:[#allocation9 + $0x38] sm:$0xf]
        %v1176 = vld [vmem:[#allocation9 + $0x3c] sm:$0xf]
        %v1193 = vunpack.c.l.b16 %v1161
        %v1194 = vunpack.c.l.b16 %v1162
        %v1195 = vunpack.c.l.b16 %v1163
        %v1196 = vunpack.c.l.b16 %v1164
        %v1197 = vunpack.c.l.b16 %v1165
        %v1198 = vunpack.c.l.b16 %v1166
        %v1199 = vunpack.c.l.b16 %v1167
        %v1200 = vunpack.c.l.b16 %v1168
        %v1201 = vunpack.c.l.b16 %v1169
        %v1202 = vunpack.c.l.b16 %v1170
        %v1203 = vunpack.c.l.b16 %v1171
        %v1204 = vunpack.c.l.b16 %v1172
        %v1205 = vunpack.c.l.b16 %v1173
        %v1206 = vunpack.c.l.b16 %v1174
        %v1207 = vunpack.c.l.b16 %v1175
        %v1208 = vunpack.c.l.b16 %v1176
        %v1209 = vpack.c.b16 %v1194, %v1193
        %v1210 = vpack.c.b16 %v1196, %v1195
        %v1211 = vpack.c.b16 %v1198, %v1197
        %v1212 = vpack.c.b16 %v1200, %v1199
        %v1213 = vpack.c.b16 %v1202, %v1201
        %v1214 = vpack.c.b16 %v1204, %v1203
        %v1215 = vpack.c.b16 %v1206, %v1205
        %v1216 = vpack.c.b16 %v1208, %v1207
        %1225 = vmatprep.subr.bf16.mxu0 0
        %1226 = vmatpush1.bf16.msra.mxu0 %v1216
        %1227 = vmatprep.subr.bf16.mxu0 0
        %1228 = vmatpush1.bf16.msra.mxu0 %v1215
        %1229 = vmatprep.subr.bf16.mxu0 0
        %1230 = vmatpush1.bf16.msra.mxu0 %v1214
        %1231 = vmatprep.subr.bf16.mxu0 0
        %1232 = vmatpush1.bf16.msra.mxu0 %v1213
        %1233 = vmatprep.subr.bf16.mxu0 0
        %1234 = vmatpush1.bf16.msra.mxu0 %v1212
        %1235 = vmatprep.subr.bf16.mxu0 0
        %1236 = vmatpush1.bf16.msra.mxu0 %v1211
        %1237 = vmatprep.subr.bf16.mxu0 0
        %1238 = vmatpush1.bf16.msra.mxu0 %v1210
        %1239 = vmatprep.subr.bf16.mxu0 0
        %1240 = vmatpush1.bf16.msra.mxu0 %v1209
        %1241 = vmatprep.subr.bf16.mxu0 0
        %1242 = vmatpush2.bf16.msra.mxu0 0
        %1243 = vmatprep.subr.bf16.mxu0 0
        %1244 = vmatpush2.bf16.msra.mxu0 0
        %1245 = vmatprep.subr.bf16.mxu0 0
        %1246 = vmatpush2.bf16.msra.mxu0 0
        %1247 = vmatprep.subr.bf16.mxu0 0
        %1248 = vmatpush2.bf16.msra.mxu0 0
        %1249 = vmatprep.subr.bf16.mxu0 0
        %1250 = vmatpush2.bf16.msra.mxu0 0
        %1251 = vmatprep.subr.bf16.mxu0 0
        %1252 = vmatpush2.bf16.msra.mxu0 0
        %1253 = vmatprep.subr.bf16.mxu0 0
        %1254 = vmatpush2.bf16.msra.mxu0 0
        %1255 = vmatprep.subr.bf16.mxu0 0
        %1256 = vmatpush2.bf16.msra.mxu0 0
        %1257 = vmatprep.mubr.bf16.mxu0 0
        %1258 = vmatmul.mubr.bf16.gmra.mxu0 %v1160
        %v1259 = vpop.f32.mrf.mxu0
        %v1260 = vadd.f32 0.0, %v1259
        %v1261 = vpop.f32.mrf.mxu0
        %v1262 = vpop.f32.mrf.mxu0
        %v1263 = vadd.f32 0.0, %v1262
        %v1264 = vpop.f32.mrf.mxu0
        %1265 = vdwg.mxu0
        %s1266 = scalar_lea.vmem [#allocation9], 64
        %v1267 = vld [vmem:[%s1266] sm:$0xf]
        %v1268 = vld [vmem:[%s1266 + $0x4] sm:$0xf]
        %v1269 = vld [vmem:[%s1266 + $0x8] sm:$0xf]
        %v1270 = vld [vmem:[%s1266 + $0xc] sm:$0xf]
        %v1271 = vld [vmem:[%s1266 + $0x10] sm:$0xf]
        %v1272 = vld [vmem:[%s1266 + $0x14] sm:$0xf]
        %v1273 = vld [vmem:[%s1266 + $0x18] sm:$0xf]
        %v1274 = vld [vmem:[%s1266 + $0x1c] sm:$0xf]
        %v1275 = vld [vmem:[%s1266 + $0x20] sm:$0xf]
        %v1276 = vld [vmem:[%s1266 + $0x24] sm:$0xf]
        %v1277 = vld [vmem:[%s1266 + $0x28] sm:$0xf]
        %v1278 = vld [vmem:[%s1266 + $0x2c] sm:$0xf]
        %v1279 = vld [vmem:[%s1266 + $0x30] sm:$0xf]
        %v1280 = vld [vmem:[%s1266 + $0x34] sm:$0xf]
        %v1281 = vld [vmem:[%s1266 + $0x38] sm:$0xf]
        %v1282 = vld [vmem:[%s1266 + $0x3c] sm:$0xf]
        %s1283 = scalar_lea.vmem [#allocation9], 128
        %v1284 = vld [vmem:[%s1283] sm:$0xf]
        %v1285 = vld [vmem:[%s1283 + $0x4] sm:$0xf]
        %v1286 = vld [vmem:[%s1283 + $0x8] sm:$0xf]
        %v1287 = vld [vmem:[%s1283 + $0xc] sm:$0xf]
        %v1288 = vld [vmem:[%s1283 + $0x10] sm:$0xf]
        %v1289 = vld [vmem:[%s1283 + $0x14] sm:$0xf]
        %v1290 = vld [vmem:[%s1283 + $0x18] sm:$0xf]
        %v1291 = vld [vmem:[%s1283 + $0x1c] sm:$0xf]
        %v1292 = vld [vmem:[%s1283 + $0x20] sm:$0xf]
        %v1293 = vld [vmem:[%s1283 + $0x24] sm:$0xf]
        %v1294 = vld [vmem:[%s1283 + $0x28] sm:$0xf]
        %v1295 = vld [vmem:[%s1283 + $0x2c] sm:$0xf]
        %v1296 = vld [vmem:[%s1283 + $0x30] sm:$0xf]
        %v1297 = vld [vmem:[%s1283 + $0x34] sm:$0xf]
        %v1298 = vld [vmem:[%s1283 + $0x38] sm:$0xf]
        %v1299 = vld [vmem:[%s1283 + $0x3c] sm:$0xf]
        %v1316 = vunpack.c.l.b16 %v1284
        %v1317 = vunpack.c.l.b16 %v1285
        %v1318 = vunpack.c.l.b16 %v1286
        %v1319 = vunpack.c.l.b16 %v1287
        %v1320 = vunpack.c.l.b16 %v1288
        %v1321 = vunpack.c.l.b16 %v1289
        %v1322 = vunpack.c.l.b16 %v1290
        %v1323 = vunpack.c.l.b16 %v1291
        %v1324 = vunpack.c.l.b16 %v1292
        %v1325 = vunpack.c.l.b16 %v1293
        %v1326 = vunpack.c.l.b16 %v1294
        %v1327 = vunpack.c.l.b16 %v1295
        %v1328 = vunpack.c.l.b16 %v1296
        %v1329 = vunpack.c.l.b16 %v1297
        %v1330 = vunpack.c.l.b16 %v1298
        %v1331 = vunpack.c.l.b16 %v1299
        %v1332 = vpack.c.b16 %v1317, %v1316
        %v1333 = vpack.c.b16 %v1319, %v1318
        %v1334 = vpack.c.b16 %v1321, %v1320
        %v1335 = vpack.c.b16 %v1323, %v1322
        %v1336 = vpack.c.b16 %v1325, %v1324
        %v1337 = vpack.c.b16 %v1327, %v1326
        %v1338 = vpack.c.b16 %v1329, %v1328
        %v1339 = vpack.c.b16 %v1331, %v1330
        %1348 = vmatprep.subr.bf16.mxu0 0
        %1349 = vmatpush1.bf16.msra.mxu0 %v1339
        %1350 = vmatprep.subr.bf16.mxu0 0
        %1351 = vmatpush1.bf16.msra.mxu0 %v1338
        %1352 = vmatprep.subr.bf16.mxu0 0
        %1353 = vmatpush1.bf16.msra.mxu0 %v1337
        %1354 = vmatprep.subr.bf16.mxu0 0
        %1355 = vmatpush1.bf16.msra.mxu0 %v1336
        %1356 = vmatprep.subr.bf16.mxu0 0
        %1357 = vmatpush1.bf16.msra.mxu0 %v1335
        %1358 = vmatprep.subr.bf16.mxu0 0
        %1359 = vmatpush1.bf16.msra.mxu0 %v1334
        %1360 = vmatprep.subr.bf16.mxu0 0
        %1361 = vmatpush1.bf16.msra.mxu0 %v1333
        %1362 = vmatprep.subr.bf16.mxu0 0
        %1363 = vmatpush1.bf16.msra.mxu0 %v1332
        %1364 = vmatprep.subr.bf16.mxu0 0
        %1365 = vmatpush2.bf16.msra.mxu0 0
        %1366 = vmatprep.subr.bf16.mxu0 0
        %1367 = vmatpush2.bf16.msra.mxu0 0
        %1368 = vmatprep.subr.bf16.mxu0 0
        %1369 = vmatpush2.bf16.msra.mxu0 0
        %1370 = vmatprep.subr.bf16.mxu0 0
        %1371 = vmatpush2.bf16.msra.mxu0 0
        %1372 = vmatprep.subr.bf16.mxu0 0
        %1373 = vmatpush2.bf16.msra.mxu0 0
        %1374 = vmatprep.subr.bf16.mxu0 0
        %1375 = vmatpush2.bf16.msra.mxu0 0
        %1376 = vmatprep.subr.bf16.mxu0 0
        %1377 = vmatpush2.bf16.msra.mxu0 0
        %1378 = vmatprep.subr.bf16.mxu0 0
        %1379 = vmatpush2.bf16.msra.mxu0 0
        %1380 = vmatprep.mubr.bf16.mxu0 0
        %1381 = vmatmul.mubr.bf16.gmra.mxu0 %v1160
        %v1382 = vpop.f32.mrf.mxu0
        %v1383 = vadd.f32 0.0, %v1382
        %v1384 = vpop.f32.mrf.mxu0
        %v1385 = vpop.f32.mrf.mxu0
        %v1386 = vadd.f32 0.0, %v1385
        %v1387 = vpop.f32.mrf.mxu0
        %1388 = vdwg.mxu0
        %v1391 = vrot.slane %v1260, 7
        %v1392 = vrot.slane %v1263, 7
        %v1393 = vsel %vm672, %v1391, %v1392
        %v1396 = vsel %vm672, 0.0, %v1391
        %v1413 = vunpack.c.l.b16 %v1267
        %v1414 = vunpack.c.l.b16 %v1268
        %v1415 = vunpack.c.l.b16 %v1269
        %v1416 = vunpack.c.l.b16 %v1270
        %v1417 = vunpack.c.l.b16 %v1271
        %v1418 = vunpack.c.l.b16 %v1272
        %v1419 = vunpack.c.l.b16 %v1273
        %v1420 = vunpack.c.l.b16 %v1274
        %v1421 = vunpack.c.l.b16 %v1275
        %v1422 = vunpack.c.l.b16 %v1276
        %v1423 = vunpack.c.l.b16 %v1277
        %v1424 = vunpack.c.l.b16 %v1278
        %v1425 = vunpack.c.l.b16 %v1279
        %v1426 = vunpack.c.l.b16 %v1280
        %v1427 = vunpack.c.l.b16 %v1281
        %v1428 = vunpack.c.l.b16 %v1282
        %v1429 = vpack.c.b16 %v1414, %v1413
        %v1430 = vpack.c.b16 %v1416, %v1415
        %v1431 = vpack.c.b16 %v1418, %v1417
        %v1432 = vpack.c.b16 %v1420, %v1419
        %v1433 = vpack.c.b16 %v1422, %v1421
        %v1434 = vpack.c.b16 %v1424, %v1423
        %v1435 = vpack.c.b16 %v1426, %v1425
        %v1436 = vpack.c.b16 %v1428, %v1427
        %1445 = vmatprep.subr.bf16.mxu0 0
        %1446 = vmatpush1.bf16.msra.mxu0 %v1436
        %1447 = vmatprep.subr.bf16.mxu0 0
        %1448 = vmatpush1.bf16.msra.mxu0 %v1435
        %1449 = vmatprep.subr.bf16.mxu0 0
        %1450 = vmatpush1.bf16.msra.mxu0 %v1434
        %1451 = vmatprep.subr.bf16.mxu0 0
        %1452 = vmatpush1.bf16.msra.mxu0 %v1433
        %1453 = vmatprep.subr.bf16.mxu0 0
        %1454 = vmatpush1.bf16.msra.mxu0 %v1432
        %1455 = vmatprep.subr.bf16.mxu0 0
        %1456 = vmatpush1.bf16.msra.mxu0 %v1431
        %1457 = vmatprep.subr.bf16.mxu0 0
        %1458 = vmatpush1.bf16.msra.mxu0 %v1430
        %1459 = vmatprep.subr.bf16.mxu0 0
        %1460 = vmatpush1.bf16.msra.mxu0 %v1429
        %1461 = vmatprep.subr.bf16.mxu0 0
        %1462 = vmatpush2.bf16.msra.mxu0 0
        %1463 = vmatprep.subr.bf16.mxu0 0
        %1464 = vmatpush2.bf16.msra.mxu0 0
        %1465 = vmatprep.subr.bf16.mxu0 0
        %1466 = vmatpush2.bf16.msra.mxu0 0
        %1467 = vmatprep.subr.bf16.mxu0 0
        %1468 = vmatpush2.bf16.msra.mxu0 0
        %1469 = vmatprep.subr.bf16.mxu0 0
        %1470 = vmatpush2.bf16.msra.mxu0 0
        %1471 = vmatprep.subr.bf16.mxu0 0
        %1472 = vmatpush2.bf16.msra.mxu0 0
        %1473 = vmatprep.subr.bf16.mxu0 0
        %1474 = vmatpush2.bf16.msra.mxu0 0
        %1475 = vmatprep.subr.bf16.mxu0 0
        %1476 = vmatpush2.bf16.msra.mxu0 0
        %1477 = vmatprep.mubr.bf16.mxu0 0
        %1478 = vmatmul.mubr.bf16.gmra.mxu0 %v1160
        %v1479 = vpop.f32.mrf.mxu0
        %v1480 = vadd.f32 %v1396, %v1479
        %v1481 = vpop.f32.mrf.mxu0
        %v1482 = vpop.f32.mrf.mxu0
        %v1483 = vadd.f32 %v1393, %v1482
        %v1484 = vpop.f32.mrf.mxu0
        %1485 = vdwg.mxu0
        %v1488 = vrot.slane %v1383, 1
        %v1489 = vrot.slane %v1386, 1
        %v1490 = vsel %vm1133, %v1488, %v1489
        %v1493 = vsel %vm1133, %v1489, 0.0
        %v1494 = vadd.f32 %v1480, %v1490
        %v1495 = vadd.f32 %v1483, %v1493
        %v1497 = vlaneseq
        %v1498 = vshrl.u32 %v1497, 7
        %v1499 = vsub.s32 0, %v1498
        %v1500 = vrot.slane %v429, %v1499
        %v1502 = vmul.f32 %v1494, %v1500
        %v1503 = vmul.f32 %v1495, %v1500
        %v1505 = vlaneseq
        %v1506 = vshrl.u32 %v1505, 7
        %v1507 = vsub.s32 0, %v1506
        %v1508 = vrot.slane %v430, %v1507
        %v1510 = vadd.f32 %v1502, %v1508
        %v1511 = vadd.f32 %v1503, %v1508
        %1512 = vst [vmem:[%s421] sm:$0xff] %v1510
        %1513 = vst [vmem:[%s421 + $0x8] sm:$0xff] %v1511
        %s1514 = sand.u32 %s252, 1
        %s1515 = scalar_lea.sflag [#allocation5], %s1514
        %s1516 = sand.u32 %s252, 1
        %s1517 = smul.addr %s1516, 16
        %s1518 = scalar_lea.vmem [#allocation11], %s1517
        // Predicated region
        $region77: #{tpu_custom_call.1} parent=59 // pred_check
          %p1519 = pneg %p262
        $region78: #{tpu_custom_call.1} parent=59 // pred_check_branch
          %1521 = sbr.rel (%p1519) target = $region80
        $region79: #{tpu_custom_call.1} parent=59 // pred_region
          %s1523 = ssub.s32 256, 256
          %1524 = vsyncadd %s1515, %s1523
          %s1525 = smul.addr %s29, 2
          %s1526 = smul.addr %s1525, 128
          %s1527 = scalar_lea.hbm %s10, %s1526
          %s1528 = sshll.u32 %s1518, 4
          %s1529 = int_to_ptr.vmem [resolvable:$true] %s1528
          %1534 = dma.vmem_to_hbm [thread:$0]  %s1529, 256, %s1527, %s1515, 128, 128, 8
        $region80: #{tpu_custom_call.1} parent=59 // pred_fallthru
          _
      $region60: #{tpu_custom_call.1} parent=5 // pred_fallthru
        _
      %p1535 = scmp.le.s32.totalorder 2, %s24
      // Predicated region
      $region81: #{tpu_custom_call.1} parent=5 // pred_check
        %p1536 = pneg %p1535
      $region82: #{tpu_custom_call.1} parent=5 // pred_check_branch
        %1538 = sbr.rel (%p1536) target = $region84
      $region83: #{tpu_custom_call.1} parent=5 // pred_region
        %s1539 = ssub.s32 %s24, 2
        // Predicated region
        $region85: #{tpu_custom_call.1} parent=83 // pred_check
          %p1540 = pneg %p268
        $region86: #{tpu_custom_call.1} parent=83 // pred_check_branch
          %1542 = sbr.rel (%p1540) target = $region88
        $region87: #{tpu_custom_call.1} parent=83 // pred_region
          %s1543 = sand.u32 %s253, 1
          %s1544 = scalar_lea.sflag [#allocation5], %s1543
          %s1545 = sand.u32 %s253, 1
          %s1546 = smul.addr %s1545, 16
          %s1547 = scalar_lea.vmem [#allocation11], %s1546
          %1548 = dma.done %s1544, 256
        $region88: #{tpu_custom_call.1} parent=83 // pred_fallthru
          _
      $region84: #{tpu_custom_call.1} parent=5 // pred_fallthru
        _
    $region6: #{tpu_custom_call.1} parent=1 // loop_footer
      %s28 = sadd.s32 1, %s24
    $region7: #{tpu_custom_call.1} parent=1 // loop_footer_branch
      %23 = sbr.rel target = $region3
    $region8: #{tpu_custom_call.1} parent=1 // loop_exit
      _
    %1549 = vsyncpa [#allocation4], 1
    %s1550 = scalar_lea.sflag [#allocation4], 1
    %1551 = vsyncpa %s1550, 1
    %1552 = vsyncpa [#allocation7], 1
    %1553 = vsyncpa [#allocation10], 1
    %1554 = vsyncpa [#allocation5], 1
    %s1555 = scalar_lea.sflag [#allocation5], 1
    %1556 = vsyncpa %s1555, 1

</llo_original>
